<compile_context>
chip_gen: v6e
topology: v6e:2x2x1
jax: 0.10.0
libtpu: 0.0.40
codegen_flags: <defaults>
</compile_context>

<pallas_src>
import jax
import jax.numpy as jnp
from jax.experimental import pallas as pl
from jax.experimental.pallas import tpu as pltpu


def _round_up(x, m):
    return (x + m - 1) // m * m


def _pick_samples_per_block(n):
    # Largest block of samples per grid step (<= 8) that still leaves >= 2
    # grid steps when possible (keeps both v7x TensorCores busy).
    for cand in (8, 4, 2):
        if n % cand == 0 and n // cand >= 2:
            return cand
    return 1


def _make_kernel(*, sb, cin, cmid_p, width, lc, chunk):
    wp2 = width + 2  # padded image row width

    def kernel(x_ref, wct_ref, bc_ref, mask_ref, wp_ref, bp_ref, out_ref):
        rows = []
        for smp in range(sb):
            pooled = jnp.zeros((cmid_p, 1), jnp.float32)
            for c0 in range(0, lc, chunk):
                cl = min(chunk, lc - c0)
                acc = jnp.zeros((cmid_p, cl), jnp.float32)
                # 3x3 conv = 9 accumulated dots against lane-shifted windows of
                # the flattened padded image (fused im2col, K = Cin per tap).
                for t in range(9):
                    dy, dx = divmod(t, 3)
                    s = dy * wp2 + dx + c0
                    acc = acc + jnp.dot(
                        wct_ref[:, t * cin:(t + 1) * cin],
                        x_ref[0, smp, :, s:s + cl],
                        preferred_element_type=jnp.float32)
                hact = jnp.maximum(acc + bc_ref[...], 0.0)          # bias + ReLU
                # masked lane-axis reduce: mask is 1/(H*W) on valid columns,
                # 0 on the 2 junk columns per image row -> pooled holds the MEAN
                pooled = pooled + jnp.sum(
                    hact * mask_ref[:, c0:c0 + cl], axis=1, keepdims=True)
            # projection (broadcast-multiply + sublane reduce, all f32)
            emb = jnp.sum(pooled * wp_ref[...], axis=0, keepdims=True) + bp_ref[...]
            # F.normalize(emb, p=2, dim=1): x / max(||x||_2, 1e-12)
            sq = jnp.sum(emb * emb, axis=1, keepdims=True)
            rows.append(emb * jax.lax.rsqrt(jnp.maximum(sq, 1e-24)))
        out_ref[0] = rows[0] if sb == 1 else jnp.concatenate(rows, axis=0)

    return kernel


def metric_learning_encoder_forward(x, w_conv, b_conv, w_proj, b_proj,
                                    *, conv_dtype=jnp.bfloat16,
                                    lane_chunk=2048):
    """x: (N, Cin, H, W) float32 NCHW.  Returns (N, D) L2-normalized embeddings."""
    N, Cin, H, W = x.shape
    Cmid = w_conv.shape[-1]
    D = w_proj.shape[-1]

    Hp, Wp = H + 2, W + 2
    L = Hp * Wp                      # flattened padded image length
    Lp = L + 2                       # +2 so the (dy,dx)=(2,2) tap window stays in bounds
    Lc = H * Wp                      # conv output columns (incl. 2 junk cols per row)
    K = 9 * Cin
    Cmid_p = _round_up(Cmid, 8)      # sublane pad only (Cmid lives on sublanes)
    Dp = _round_up(D, 128)           # lane-dense embedding / output store

    sb = _pick_samples_per_block(N)
    nblk = N // sb
    chunk = min(lane_chunk, Lc)      # bounds per-chunk f32 activation temporaries

    # ---- wrapper-side layout: spatial zero pad + flatten (~1x input bytes;
    # ---- no materialized im2col) ----
    x_pad = jnp.pad(x, ((0, 0), (0, 0), (1, 1), (1, 1)))            # (N, Cin, H+2, W+2)
    xf = x_pad.reshape(N, Cin, L)
    xf = jnp.pad(xf, ((0, 0), (0, 0), (0, Lp - L)))
    xf = xf.reshape(nblk, sb, Cin, Lp).astype(conv_dtype)

    # conv weight as (Cmid_p, 9*Cin): column k = (dy*3+dx)*Cin + ci
    wct = jnp.transpose(w_conv.reshape(K, Cmid))
    wct = jnp.pad(wct, ((0, Cmid_p - Cmid), (0, 0))).astype(conv_dtype)
    bc = jnp.pad(b_conv.reshape(Cmid, 1),
                 ((0, Cmid_p - Cmid), (0, 0))).astype(jnp.float32)
    # pooling mask over the Lc conv columns (folds in the 1/(H*W) mean)
    cols = jnp.arange(Lc) % Wp
    mask = jnp.where(cols < W, 1.0 / float(H * W), 0.0)
    mask = mask.astype(jnp.float32).reshape(1, Lc)
    wp = jnp.pad(w_proj, ((0, Cmid_p - Cmid), (0, Dp - D))).astype(jnp.float32)
    bp = jnp.pad(b_proj.reshape(1, D), ((0, 0), (0, Dp - D))).astype(jnp.float32)

    # advisory cost: unpadded dims, real streamed bytes
    cost = pl.CostEstimate(
        flops=2 * N * H * W * K * Cmid + 2 * N * Cmid * D,
        transcendentals=N,
        bytes_accessed=(xf.size * xf.dtype.itemsize
                        + wct.size * wct.dtype.itemsize
                        + (bc.size + mask.size + wp.size + bp.size) * 4
                        + N * Dp * 4),
    )

    kernel = _make_kernel(sb=sb, cin=Cin, cmid_p=Cmid_p, width=W,
                          lc=Lc, chunk=chunk)

    out = pl.pallas_call(
        kernel,
        out_shape=jax.ShapeDtypeStruct((nblk, sb, Dp), jnp.float32),
        grid_spec=pltpu.PrefetchScalarGridSpec(
            num_scalar_prefetch=0,
            grid=(nblk,),
            in_specs=[
                pl.BlockSpec((1, sb, Cin, Lp), lambda n: (n, 0, 0, 0)),  # images
                pl.BlockSpec((Cmid_p, K), lambda n: (0, 0)),             # conv weight
                pl.BlockSpec((Cmid_p, 1), lambda n: (0, 0)),             # conv bias
                pl.BlockSpec((1, Lc), lambda n: (0, 0)),                 # pool mask
                pl.BlockSpec((Cmid_p, Dp), lambda n: (0, 0)),            # proj weight
                pl.BlockSpec((1, Dp), lambda n: (0, 0)),                 # proj bias
            ],
            out_specs=pl.BlockSpec((1, sb, Dp), lambda n: (n, 0, 0)),
        ),
        compiler_params=pltpu.CompilerParams(
            dimension_semantics=("parallel",),
            vmem_limit_bytes=48 * 1024 * 1024),   # headroom under v7x 64 MiB
        cost_estimate=cost,
    )(xf, wct, bc, mask, wp, bp)

    return out.reshape(N, Dp)[:, :D]


def _reference_forward(x, w_conv, b_conv, w_proj, b_proj):
    """Pure-JAX reference for correctness check."""
    x_nhwc = jnp.transpose(x, (0, 2, 3, 1))
    h = jax.lax.conv_general_dilated(
        x_nhwc, w_conv, window_strides=(1, 1), padding="SAME",
        dimension_numbers=("NHWC", "HWIO", "NHWC"))
    h = jnp.maximum(h + b_conv, 0.0)
    feat = jnp.mean(h, axis=(1, 2))
    emb = feat @ w_proj + b_proj
    norm = jnp.maximum(jnp.linalg.norm(emb, axis=1, keepdims=True), 1e-12)
    return emb / norm


if __name__ == "__main__":
    # Small shapes consistent with an image embedding model: N=2, Cin=3 (RGB,
    # as implied by the ImageNet normalization in transform), 16x16 spatial,
    # Cmid=8 conv channels, D=32-dim embedding.
    N, Cin, H, W = 2, 3, 16, 16
    Cmid, D = 8, 32

    key = jax.random.PRNGKey(0)
    k_x, k_wc, k_bc, k_wp, k_bp = jax.random.split(key, 5)

    x = jax.random.normal(k_x, (N, Cin, H, W), dtype=jnp.float32)
    w_conv = jax.random.normal(k_wc, (3, 3, Cin, Cmid), dtype=jnp.float32) * 0.1
    b_conv = jax.random.normal(k_bc, (Cmid,), dtype=jnp.float32) * 0.1
    w_proj = jax.random.normal(k_wp, (Cmid, D), dtype=jnp.float32) * 0.1
    b_proj = jax.random.normal(k_bp, (D,), dtype=jnp.float32) * 0.1

    ref = _reference_forward(x, w_conv, b_conv, w_proj, b_proj)

    # f32 streaming path: tight-tolerance structural check.
    out_f32 = metric_learning_encoder_forward(
        x, w_conv, b_conv, w_proj, b_proj, conv_dtype=jnp.float32)
    out_f32 = jax.block_until_ready(out_f32)
    assert out_f32.shape == (N, D)
    assert jnp.allclose(out_f32, ref, atol=1e-4, rtol=1e-4), "f32 mismatch vs reference"

    # default bf16 streaming path (halved HBM bytes); looser tolerance since the
    # streamed image/conv-weight are rounded to bf16 (accumulation stays f32).
    out_bf16 = metric_learning_encoder_forward(x, w_conv, b_conv, w_proj, b_proj)
    out_bf16 = jax.block_until_ready(out_bf16)
    assert out_bf16.shape == (N, D)
    assert jnp.allclose(out_bf16, ref, atol=1e-2, rtol=1e-2), "bf16 mismatch vs reference"

    print("KERNEL_OK")
</pallas_src>

<mosaic_0001>
module attributes {stable_mosaic.version = 11 : i64} {
  func.func @kernel(%arg0: i32, %arg1: memref<1x1x3x326xf32, #tpu.memory_space<vmem>>, %arg2: memref<8x27xf32, #tpu.memory_space<vmem>>, %arg3: memref<8x1xf32, #tpu.memory_space<vmem>>, %arg4: memref<1x288xf32, #tpu.memory_space<vmem>>, %arg5: memref<8x128xf32, #tpu.memory_space<vmem>>, %arg6: memref<1x128xf32, #tpu.memory_space<vmem>>, %arg7: memref<1x1x128xf32, #tpu.memory_space<vmem>>) attributes {dimension_semantics = [#tpu.dimension_semantics<parallel>], iteration_bounds = array<i64: 2>, scalar_prefetch = 0 : i64, scratch_operands = 0 : i64, tpu.core_type = #tpu.core_type<tc>, window_params = [{transform_indices = @transform_0, window_bounds = array<i64: 1, 1, 3, 326>}, {pipeline_mode = #tpu.pipeline_mode<synchronous>, transform_indices = @transform_1, window_bounds = array<i64: 8, 27>}, {pipeline_mode = #tpu.pipeline_mode<synchronous>, transform_indices = @transform_2, window_bounds = array<i64: 8, 1>}, {pipeline_mode = #tpu.pipeline_mode<synchronous>, transform_indices = @transform_3, window_bounds = array<i64: 1, 288>}, {pipeline_mode = #tpu.pipeline_mode<synchronous>, transform_indices = @transform_4, window_bounds = array<i64: 8, 128>}, {pipeline_mode = #tpu.pipeline_mode<synchronous>, transform_indices = @transform_5, window_bounds = array<i64: 1, 128>}, {transform_indices = @transform_6, window_bounds = array<i64: 1, 1, 128>}]} {
    %cst = arith.constant 0.000000e+00 : f32
    %0 = vector.broadcast %cst : f32 to vector<8x1xf32>
    %cst_0 = arith.constant 0.000000e+00 : f32
    %1 = vector.broadcast %cst_0 : f32 to vector<8x288xf32>
    %c0 = arith.constant 0 : index
    %c0_1 = arith.constant 0 : index
    %2 = vector.load %arg2[%c0, %c0_1] : memref<8x27xf32, #tpu.memory_space<vmem>>, vector<8x3xf32>
    %c0_2 = arith.constant 0 : index
    %c0_3 = arith.constant 0 : index
    %c0_4 = arith.constant 0 : index
    %c0_5 = arith.constant 0 : index
    %3 = vector.load %arg1[%c0_2, %c0_3, %c0_4, %c0_5] : memref<1x1x3x326xf32, #tpu.memory_space<vmem>>, vector<1x1x3x288xf32>
    %4 = vector.shape_cast %3 : vector<1x1x3x288xf32> to vector<3x288xf32>
    %cst_6 = arith.constant dense<0.000000e+00> : vector<8x288xf32>
    %5 = tpu.matmul %2, %4, %cst_6 {dimension_numbers = #tpu.dot_dimension_numbers<[1], [0], [0], [1], [0, 0, 1, 1], [], []>} : vector<8x3xf32>, vector<3x288xf32>, vector<8x288xf32> -> vector<8x288xf32>
    %6 = arith.addf %1, %5 : vector<8x288xf32>
    %c0_7 = arith.constant 0 : index
    %c3 = arith.constant 3 : index
    %7 = vector.load %arg2[%c0_7, %c3] : memref<8x27xf32, #tpu.memory_space<vmem>>, vector<8x3xf32>
    %c0_8 = arith.constant 0 : index
    %c0_9 = arith.constant 0 : index
    %c0_10 = arith.constant 0 : index
    %c1 = arith.constant 1 : index
    %8 = vector.load %arg1[%c0_8, %c0_9, %c0_10, %c1] : memref<1x1x3x326xf32, #tpu.memory_space<vmem>>, vector<1x1x3x288xf32>
    %9 = vector.shape_cast %8 : vector<1x1x3x288xf32> to vector<3x288xf32>
    %cst_11 = arith.constant dense<0.000000e+00> : vector<8x288xf32>
    %10 = tpu.matmul %7, %9, %cst_11 {dimension_numbers = #tpu.dot_dimension_numbers<[1], [0], [0], [1], [0, 0, 1, 1], [], []>} : vector<8x3xf32>, vector<3x288xf32>, vector<8x288xf32> -> vector<8x288xf32>
    %11 = arith.addf %6, %10 : vector<8x288xf32>
    %c0_12 = arith.constant 0 : index
    %c6 = arith.constant 6 : index
    %12 = vector.load %arg2[%c0_12, %c6] : memref<8x27xf32, #tpu.memory_space<vmem>>, vector<8x3xf32>
    %c0_13 = arith.constant 0 : index
    %c0_14 = arith.constant 0 : index
    %c0_15 = arith.constant 0 : index
    %c2 = arith.constant 2 : index
    %13 = vector.load %arg1[%c0_13, %c0_14, %c0_15, %c2] : memref<1x1x3x326xf32, #tpu.memory_space<vmem>>, vector<1x1x3x288xf32>
    %14 = vector.shape_cast %13 : vector<1x1x3x288xf32> to vector<3x288xf32>
    %cst_16 = arith.constant dense<0.000000e+00> : vector<8x288xf32>
    %15 = tpu.matmul %12, %14, %cst_16 {dimension_numbers = #tpu.dot_dimension_numbers<[1], [0], [0], [1], [0, 0, 1, 1], [], []>} : vector<8x3xf32>, vector<3x288xf32>, vector<8x288xf32> -> vector<8x288xf32>
    %16 = arith.addf %11, %15 : vector<8x288xf32>
    %c0_17 = arith.constant 0 : index
    %c9 = arith.constant 9 : index
    %17 = vector.load %arg2[%c0_17, %c9] : memref<8x27xf32, #tpu.memory_space<vmem>>, vector<8x3xf32>
    %c0_18 = arith.constant 0 : index
    %c0_19 = arith.constant 0 : index
    %c0_20 = arith.constant 0 : index
    %c18 = arith.constant 18 : index
    %18 = vector.load %arg1[%c0_18, %c0_19, %c0_20, %c18] : memref<1x1x3x326xf32, #tpu.memory_space<vmem>>, vector<1x1x3x288xf32>
    %19 = vector.shape_cast %18 : vector<1x1x3x288xf32> to vector<3x288xf32>
    %cst_21 = arith.constant dense<0.000000e+00> : vector<8x288xf32>
    %20 = tpu.matmul %17, %19, %cst_21 {dimension_numbers = #tpu.dot_dimension_numbers<[1], [0], [0], [1], [0, 0, 1, 1], [], []>} : vector<8x3xf32>, vector<3x288xf32>, vector<8x288xf32> -> vector<8x288xf32>
    %21 = arith.addf %16, %20 : vector<8x288xf32>
    %c0_22 = arith.constant 0 : index
    %c12 = arith.constant 12 : index
    %22 = vector.load %arg2[%c0_22, %c12] : memref<8x27xf32, #tpu.memory_space<vmem>>, vector<8x3xf32>
    %c0_23 = arith.constant 0 : index
    %c0_24 = arith.constant 0 : index
    %c0_25 = arith.constant 0 : index
    %c19 = arith.constant 19 : index
    %23 = vector.load %arg1[%c0_23, %c0_24, %c0_25, %c19] : memref<1x1x3x326xf32, #tpu.memory_space<vmem>>, vector<1x1x3x288xf32>
    %24 = vector.shape_cast %23 : vector<1x1x3x288xf32> to vector<3x288xf32>
    %cst_26 = arith.constant dense<0.000000e+00> : vector<8x288xf32>
    %25 = tpu.matmul %22, %24, %cst_26 {dimension_numbers = #tpu.dot_dimension_numbers<[1], [0], [0], [1], [0, 0, 1, 1], [], []>} : vector<8x3xf32>, vector<3x288xf32>, vector<8x288xf32> -> vector<8x288xf32>
    %26 = arith.addf %21, %25 : vector<8x288xf32>
    %c0_27 = arith.constant 0 : index
    %c15 = arith.constant 15 : index
    %27 = vector.load %arg2[%c0_27, %c15] : memref<8x27xf32, #tpu.memory_space<vmem>>, vector<8x3xf32>
    %c0_28 = arith.constant 0 : index
    %c0_29 = arith.constant 0 : index
    %c0_30 = arith.constant 0 : index
    %c20 = arith.constant 20 : index
    %28 = vector.load %arg1[%c0_28, %c0_29, %c0_30, %c20] : memref<1x1x3x326xf32, #tpu.memory_space<vmem>>, vector<1x1x3x288xf32>
    %29 = vector.shape_cast %28 : vector<1x1x3x288xf32> to vector<3x288xf32>
    %cst_31 = arith.constant dense<0.000000e+00> : vector<8x288xf32>
    %30 = tpu.matmul %27, %29, %cst_31 {dimension_numbers = #tpu.dot_dimension_numbers<[1], [0], [0], [1], [0, 0, 1, 1], [], []>} : vector<8x3xf32>, vector<3x288xf32>, vector<8x288xf32> -> vector<8x288xf32>
    %31 = arith.addf %26, %30 : vector<8x288xf32>
    %c0_32 = arith.constant 0 : index
    %c18_33 = arith.constant 18 : index
    %32 = vector.load %arg2[%c0_32, %c18_33] : memref<8x27xf32, #tpu.memory_space<vmem>>, vector<8x3xf32>
    %c0_34 = arith.constant 0 : index
    %c0_35 = arith.constant 0 : index
    %c0_36 = arith.constant 0 : index
    %c36 = arith.constant 36 : index
    %33 = vector.load %arg1[%c0_34, %c0_35, %c0_36, %c36] : memref<1x1x3x326xf32, #tpu.memory_space<vmem>>, vector<1x1x3x288xf32>
    %34 = vector.shape_cast %33 : vector<1x1x3x288xf32> to vector<3x288xf32>
    %cst_37 = arith.constant dense<0.000000e+00> : vector<8x288xf32>
    %35 = tpu.matmul %32, %34, %cst_37 {dimension_numbers = #tpu.dot_dimension_numbers<[1], [0], [0], [1], [0, 0, 1, 1], [], []>} : vector<8x3xf32>, vector<3x288xf32>, vector<8x288xf32> -> vector<8x288xf32>
    %36 = arith.addf %31, %35 : vector<8x288xf32>
    %c0_38 = arith.constant 0 : index
    %c21 = arith.constant 21 : index
    %37 = vector.load %arg2[%c0_38, %c21] : memref<8x27xf32, #tpu.memory_space<vmem>>, vector<8x3xf32>
    %c0_39 = arith.constant 0 : index
    %c0_40 = arith.constant 0 : index
    %c0_41 = arith.constant 0 : index
    %c37 = arith.constant 37 : index
    %38 = vector.load %arg1[%c0_39, %c0_40, %c0_41, %c37] : memref<1x1x3x326xf32, #tpu.memory_space<vmem>>, vector<1x1x3x288xf32>
    %39 = vector.shape_cast %38 : vector<1x1x3x288xf32> to vector<3x288xf32>
    %cst_42 = arith.constant dense<0.000000e+00> : vector<8x288xf32>
    %40 = tpu.matmul %37, %39, %cst_42 {dimension_numbers = #tpu.dot_dimension_numbers<[1], [0], [0], [1], [0, 0, 1, 1], [], []>} : vector<8x3xf32>, vector<3x288xf32>, vector<8x288xf32> -> vector<8x288xf32>
    %41 = arith.addf %36, %40 : vector<8x288xf32>
    %c0_43 = arith.constant 0 : index
    %c24 = arith.constant 24 : index
    %42 = vector.load %arg2[%c0_43, %c24] : memref<8x27xf32, #tpu.memory_space<vmem>>, vector<8x3xf32>
    %c0_44 = arith.constant 0 : index
    %c0_45 = arith.constant 0 : index
    %c0_46 = arith.constant 0 : index
    %c38 = arith.constant 38 : index
    %43 = vector.load %arg1[%c0_44, %c0_45, %c0_46, %c38] : memref<1x1x3x326xf32, #tpu.memory_space<vmem>>, vector<1x1x3x288xf32>
    %44 = vector.shape_cast %43 : vector<1x1x3x288xf32> to vector<3x288xf32>
    %cst_47 = arith.constant dense<0.000000e+00> : vector<8x288xf32>
    %45 = tpu.matmul %42, %44, %cst_47 {dimension_numbers = #tpu.dot_dimension_numbers<[1], [0], [0], [1], [0, 0, 1, 1], [], []>} : vector<8x3xf32>, vector<3x288xf32>, vector<8x288xf32> -> vector<8x288xf32>
    %46 = arith.addf %41, %45 : vector<8x288xf32>
    %c0_48 = arith.constant 0 : index
    %c0_49 = arith.constant 0 : index
    %47 = vector.load %arg3[%c0_48, %c0_49] : memref<8x1xf32, #tpu.memory_space<vmem>>, vector<8x1xf32>
    %48 = vector.broadcast %47 : vector<8x1xf32> to vector<8x288xf32>
    %49 = arith.addf %46, %48 : vector<8x288xf32>
    %cst_50 = arith.constant 0.000000e+00 : f32
    %50 = vector.broadcast %cst_50 : f32 to vector<8x288xf32>
    %51 = arith.maximumf %49, %50 : vector<8x288xf32>
    %c0_51 = arith.constant 0 : index
    %c0_52 = arith.constant 0 : index
    %52 = vector.load %arg4[%c0_51, %c0_52] : memref<1x288xf32, #tpu.memory_space<vmem>>, vector<1x288xf32>
    %53 = vector.broadcast %52 : vector<1x288xf32> to vector<8x288xf32>
    %54 = arith.mulf %51, %53 : vector<8x288xf32>
    %cst_53 = arith.constant dense<0.000000e+00> : vector<8xf32>
    %55 = vector.multi_reduction <add>, %54, %cst_53 [1] : vector<8x288xf32> to vector<8xf32>
    %56 = vector.shape_cast %55 : vector<8xf32> to vector<8x1xf32>
    %57 = arith.addf %0, %56 : vector<8x1xf32>
    %c0_54 = arith.constant 0 : index
    %c0_55 = arith.constant 0 : index
    %58 = vector.load %arg5[%c0_54, %c0_55] : memref<8x128xf32, #tpu.memory_space<vmem>>, vector<8x128xf32>
    %59 = vector.broadcast %57 : vector<8x1xf32> to vector<8x128xf32>
    %60 = arith.mulf %59, %58 : vector<8x128xf32>
    %cst_56 = arith.constant dense<0.000000e+00> : vector<128xf32>
    %61 = vector.multi_reduction <add>, %60, %cst_56 [0] : vector<8x128xf32> to vector<128xf32>
    %62 = vector.shape_cast %61 : vector<128xf32> to vector<1x128xf32>
    %c0_57 = arith.constant 0 : index
    %c0_58 = arith.constant 0 : index
    %63 = vector.load %arg6[%c0_57, %c0_58] : memref<1x128xf32, #tpu.memory_space<vmem>>, vector<1x128xf32>
    %64 = arith.addf %62, %63 : vector<1x128xf32>
    %65 = arith.mulf %64, %64 : vector<1x128xf32>
    %cst_59 = arith.constant dense<0.000000e+00> : vector<1xf32>
    %66 = vector.multi_reduction <add>, %65, %cst_59 [1] : vector<1x128xf32> to vector<1xf32>
    %67 = vector.shape_cast %66 : vector<1xf32> to vector<1x1xf32>
    %cst_60 = arith.constant 1.000000e-24 : f32
    %68 = vector.broadcast %cst_60 : f32 to vector<1x1xf32>
    %69 = arith.maximumf %67, %68 : vector<1x1xf32>
    %70 = math.rsqrt %69 : vector<1x1xf32>
    %71 = vector.broadcast %70 : vector<1x1xf32> to vector<1x128xf32>
    %72 = arith.mulf %64, %71 : vector<1x128xf32>
    %c0_61 = arith.constant 0 : index
    %c0_62 = arith.constant 0 : index
    %c0_63 = arith.constant 0 : index
    %73 = vector.load %arg7[%c0_61, %c0_62, %c0_63] : memref<1x1x128xf32, #tpu.memory_space<vmem>>, vector<1x1x128xf32>
    %74 = vector.shape_cast %73 : vector<1x1x128xf32> to vector<1x128xf32>
    %75 = vector.shape_cast %72 : vector<1x128xf32> to vector<1x1x128xf32>
    tpu.vector_store %arg7[%c0_61, %c0_62, %c0_63], %75 {strides = array<i32>} : memref<1x1x128xf32, #tpu.memory_space<vmem>>, vector<1x1x128xf32>,
    return
  }
  func.func @transform_0(%arg0: i32) -> (i32, i32, i32, i32) {
    %c0_i32 = arith.constant 0 : i32
    %c0_i32_0 = arith.constant 0 : i32
    %c0_i32_1 = arith.constant 0 : i32
    %c0_i32_2 = arith.constant 0 : i32
    return %arg0, %c0_i32, %c0_i32_0, %c0_i32_1 : i32, i32, i32, i32
  }
  func.func @transform_1(%arg0: i32) -> (i32, i32) {
    %c0_i32 = arith.constant 0 : i32
    %c0_i32_0 = arith.constant 0 : i32
    %c0_i32_1 = arith.constant 0 : i32
    return %c0_i32, %c0_i32_0 : i32, i32
  }
  func.func @transform_2(%arg0: i32) -> (i32, i32) {
    %c0_i32 = arith.constant 0 : i32
    %c0_i32_0 = arith.constant 0 : i32
    %c0_i32_1 = arith.constant 0 : i32
    return %c0_i32, %c0_i32_0 : i32, i32
  }
  func.func @transform_3(%arg0: i32) -> (i32, i32) {
    %c0_i32 = arith.constant 0 : i32
    %c0_i32_0 = arith.constant 0 : i32
    %c0_i32_1 = arith.constant 0 : i32
    return %c0_i32, %c0_i32_0 : i32, i32
  }
  func.func @transform_4(%arg0: i32) -> (i32, i32) {
    %c0_i32 = arith.constant 0 : i32
    %c0_i32_0 = arith.constant 0 : i32
    %c0_i32_1 = arith.constant 0 : i32
    return %c0_i32, %c0_i32_0 : i32, i32
  }
  func.func @transform_5(%arg0: i32) -> (i32, i32) {
    %c0_i32 = arith.constant 0 : i32
    %c0_i32_0 = arith.constant 0 : i32
    %c0_i32_1 = arith.constant 0 : i32
    return %c0_i32, %c0_i32_0 : i32, i32
  }
  func.func @transform_6(%arg0: i32) -> (i32, i32, i32) {
    %c0_i32 = arith.constant 0 : i32
    %c0_i32_0 = arith.constant 0 : i32
    %c0_i32_1 = arith.constant 0 : i32
    return %arg0, %c0_i32, %c0_i32_0 : i32, i32, i32
  }
}

</mosaic_0001>

<llo_original>
// kernel: tpu_custom_call.1
$region0: #{tpu_custom_call.1}
  #allocation0 [shape = 'u32[]', space=smem, size = 0x4, offset = 0x4, fixed_abs, tag = 'smem constant byte address 0x4 - core index']
  #allocation1 [shape = 'u32[144,128]{1,0:T(1,128)}', space=vmem, size = 0x12000, scoped, tag = 'internal scratch']
  %s0 = inlined_call_operand.vmem [shape: f32[2,1,3,326], index: 0, kind: input, shape index: {}]
  %s1 = inlined_call_operand.vmem [shape: f32[8,27], index: 1, kind: input, shape index: {}]
  %s2 = inlined_call_operand.vmem [shape: f32[8,1], index: 2, kind: input, shape index: {}]
  %s3 = inlined_call_operand.vmem [shape: f32[1,288], index: 3, kind: input, shape index: {}]
  %s4 = inlined_call_operand.vmem [shape: f32[8,128], index: 4, kind: input, shape index: {}]
  %s5 = inlined_call_operand.vmem [shape: f32[1,128], index: 5, kind: input, shape index: {}]
  %s6 = inlined_call_operand.hbm [shape: f32[2,1,128], index: 6, kind: output, shape index: {}]
  %s7 = sld [smem:[#allocation0]]
  $region57: #{tpu_custom_call.1} parent=0
    _
  %s9 = ssub.s32 1, %s7
  %s10 = scalar_select 0, %s9, %s7
  $region1: #{tpu_custom_call.1} parent=0
    #allocation2 [shape = 'u8[1024]{0}', space=vmem, size = 0x400, scoped, tag = 'output window, operand 0']
    #allocation3 [shape = 's32[2]{0}', space=sflag, size = 0x8, scoped, tag = 'scoped memory for tpu_custom_call.1']
    %11 = vsyncpa [#allocation3], 0
    %s12 = scalar_lea.sflag [#allocation3], 1
    %13 = vsyncpa %s12, 0
    loop: start=0, step=1, limit=4
    $region2: #{tpu_custom_call.1} parent=1 // loop_pre_header
      _
    $region3: #{tpu_custom_call.1} parent=1 // loop_header
      %s15 = sphi 0, %s19
      %p16 = scmp.ge.s32.totalorder %s15, 4
      %s25 = sphi 0, %s27
      %s28 = sphi 0, %s25
      %s29 = sphi 0, %s28
      %s45 = sphi 0, %s29
      %s49 = sphi 0, %s49
      %s51 = sphi 0, %s49
      %s52 = sphi 0, %s51
      %s66 = sphi 0, %s52
      %s70 = sphi 0, %s70
      %s72 = sphi 0, %s70
      %s73 = sphi 0, %s72
      %s87 = sphi 0, %s73
      %s91 = sphi 0, %s91
      %s93 = sphi 0, %s91
      %s94 = sphi 0, %s93
      %s108 = sphi 0, %s94
      %s112 = sphi 0, %s112
      %s114 = sphi 0, %s112
      %s115 = sphi 0, %s114
      %s129 = sphi 0, %s115
      %s133 = sphi 0, %s133
      %s135 = sphi 0, %s133
      %s136 = sphi 0, %s135
      %s150 = sphi 0, %s136
      %s156 = sphi 0, %s158
      %s159 = sphi 0, %s156
      %s160 = sphi 0, %s159
      %s176 = sphi 0, %s160
    $region4: #{tpu_custom_call.1} parent=1 // loop_header_branch
      %18 = sbr.rel (%p16) target = $region8
    $region5: #{tpu_custom_call.1} parent=1 // loop_body
      %s20 = ssub.s32 %s15, 1
      %s21 = ssub.s32 %s15, 2
      %s22 = sadd.s32 %s15, 1
      %s23 = ssub.s32 %s15, %s22
      %p24 = scmp.eq.s32.totalorder %s23, 0
      %s26 = sadd.s32 %s25, 1
      %s27 = scalar_select %p24, %s25, %s26
      %p30 = pneg %p24
      %p31 = scmp.eq.s32.totalorder %s15, 1
      %p32 = por %p30, %p31
      %p33 = scmp.ne.s32.totalorder %s25, %s28
      %p34 = scmp.eq.s32.totalorder %s15, 0
      %p35 = por %p33, %p34
      %p36 = scmp.ne.s32.totalorder %s25, %s28
      %p37 = scmp.eq.s32.totalorder %s20, 1
      %p38 = por %p36, %p37
      %p39 = scmp.ne.s32.totalorder %s28, %s29
      %p40 = scmp.eq.s32.totalorder %s20, 0
      %p41 = por %p39, %p40
      %p42 = scmp.ne.s32.totalorder %s28, %s29
      %p43 = scmp.eq.s32.totalorder %s21, 1
      %p44 = por %p42, %p43
      %p46 = scmp.ne.s32.totalorder %s29, %s45
      %p47 = scmp.eq.s32.totalorder %s21, 0
      %p48 = por %p46, %p47
      %s50 = sadd.s32 %s49, 1
      %p53 = scmp.eq.s32.totalorder %s15, 1
      %p54 = scmp.ne.s32.totalorder %s49, %s51
      %p55 = scmp.eq.s32.totalorder %s15, 0
      %p56 = por %p54, %p55
      %p57 = scmp.ne.s32.totalorder %s49, %s51
      %p58 = scmp.eq.s32.totalorder %s20, 1
      %p59 = por %p57, %p58
      %p60 = scmp.ne.s32.totalorder %s51, %s52
      %p61 = scmp.eq.s32.totalorder %s20, 0
      %p62 = por %p60, %p61
      %p63 = scmp.ne.s32.totalorder %s51, %s52
      %p64 = scmp.eq.s32.totalorder %s21, 1
      %p65 = por %p63, %p64
      %p67 = scmp.ne.s32.totalorder %s52, %s66
      %p68 = scmp.eq.s32.totalorder %s21, 0
      %p69 = por %p67, %p68
      %s71 = sadd.s32 %s70, 1
      %p74 = scmp.eq.s32.totalorder %s15, 1
      %p75 = scmp.ne.s32.totalorder %s70, %s72
      %p76 = scmp.eq.s32.totalorder %s15, 0
      %p77 = por %p75, %p76
      %p78 = scmp.ne.s32.totalorder %s70, %s72
      %p79 = scmp.eq.s32.totalorder %s20, 1
      %p80 = por %p78, %p79
      %p81 = scmp.ne.s32.totalorder %s72, %s73
      %p82 = scmp.eq.s32.totalorder %s20, 0
      %p83 = por %p81, %p82
      %p84 = scmp.ne.s32.totalorder %s72, %s73
      %p85 = scmp.eq.s32.totalorder %s21, 1
      %p86 = por %p84, %p85
      %p88 = scmp.ne.s32.totalorder %s73, %s87
      %p89 = scmp.eq.s32.totalorder %s21, 0
      %p90 = por %p88, %p89
      %s92 = sadd.s32 %s91, 1
      %p95 = scmp.eq.s32.totalorder %s15, 1
      %p96 = scmp.ne.s32.totalorder %s91, %s93
      %p97 = scmp.eq.s32.totalorder %s15, 0
      %p98 = por %p96, %p97
      %p99 = scmp.ne.s32.totalorder %s91, %s93
      %p100 = scmp.eq.s32.totalorder %s20, 1
      %p101 = por %p99, %p100
      %p102 = scmp.ne.s32.totalorder %s93, %s94
      %p103 = scmp.eq.s32.totalorder %s20, 0
      %p104 = por %p102, %p103
      %p105 = scmp.ne.s32.totalorder %s93, %s94
      %p106 = scmp.eq.s32.totalorder %s21, 1
      %p107 = por %p105, %p106
      %p109 = scmp.ne.s32.totalorder %s94, %s108
      %p110 = scmp.eq.s32.totalorder %s21, 0
      %p111 = por %p109, %p110
      %s113 = sadd.s32 %s112, 1
      %p116 = scmp.eq.s32.totalorder %s15, 1
      %p117 = scmp.ne.s32.totalorder %s112, %s114
      %p118 = scmp.eq.s32.totalorder %s15, 0
      %p119 = por %p117, %p118
      %p120 = scmp.ne.s32.totalorder %s112, %s114
      %p121 = scmp.eq.s32.totalorder %s20, 1
      %p122 = por %p120, %p121
      %p123 = scmp.ne.s32.totalorder %s114, %s115
      %p124 = scmp.eq.s32.totalorder %s20, 0
      %p125 = por %p123, %p124
      %p126 = scmp.ne.s32.totalorder %s114, %s115
      %p127 = scmp.eq.s32.totalorder %s21, 1
      %p128 = por %p126, %p127
      %p130 = scmp.ne.s32.totalorder %s115, %s129
      %p131 = scmp.eq.s32.totalorder %s21, 0
      %p132 = por %p130, %p131
      %s134 = sadd.s32 %s133, 1
      %p137 = scmp.eq.s32.totalorder %s15, 1
      %p138 = scmp.ne.s32.totalorder %s133, %s135
      %p139 = scmp.eq.s32.totalorder %s15, 0
      %p140 = por %p138, %p139
      %p141 = scmp.ne.s32.totalorder %s133, %s135
      %p142 = scmp.eq.s32.totalorder %s20, 1
      %p143 = por %p141, %p142
      %p144 = scmp.ne.s32.totalorder %s135, %s136
      %p145 = scmp.eq.s32.totalorder %s20, 0
      %p146 = por %p144, %p145
      %p147 = scmp.ne.s32.totalorder %s135, %s136
      %p148 = scmp.eq.s32.totalorder %s21, 1
      %p149 = por %p147, %p148
      %p151 = scmp.ne.s32.totalorder %s136, %s150
      %p152 = scmp.eq.s32.totalorder %s21, 0
      %p153 = por %p151, %p152
      %s154 = ssub.s32 %s15, %s22
      %p155 = scmp.eq.s32.totalorder %s154, 0
      %s157 = sadd.s32 %s156, 1
      %s158 = scalar_select %p155, %s156, %s157
      %p161 = pneg %p155
      %p162 = scmp.eq.s32.totalorder %s15, 1
      %p163 = por %p161, %p162
      %p164 = scmp.ne.s32.totalorder %s156, %s159
      %p165 = scmp.eq.s32.totalorder %s15, 0
      %p166 = por %p164, %p165
      %p167 = scmp.ne.s32.totalorder %s156, %s159
      %p168 = scmp.eq.s32.totalorder %s20, 1
      %p169 = por %p167, %p168
      %p170 = scmp.ne.s32.totalorder %s159, %s160
      %p171 = scmp.eq.s32.totalorder %s20, 0
      %p172 = por %p170, %p171
      %p173 = scmp.ne.s32.totalorder %s159, %s160
      %p174 = scmp.eq.s32.totalorder %s21, 1
      %p175 = por %p173, %p174
      %p177 = scmp.ne.s32.totalorder %s160, %s176
      %p178 = scmp.eq.s32.totalorder %s21, 0
      %p179 = por %p177, %p178
      %p180 = scmp.le.s32.totalorder 1, %s15
      %p181 = scmp.lt.s32.totalorder %s15, 3
      %p182 = pnand %p180, %p181
      %p183 = pneg %p182
      // Predicated region
      $region9: #{tpu_custom_call.1} parent=5 // pred_check
        _
      $region10: #{tpu_custom_call.1} parent=5 // pred_check_branch
        %185 = sbr.rel (%p182) target = $region12
      $region11: #{tpu_custom_call.1} parent=5 // pred_region
        %s186 = ssub.s32 %s15, 1
        // Predicated region
        $region13: #{tpu_custom_call.1} parent=11 // pred_check
          %p187 = pneg %p62
        $region14: #{tpu_custom_call.1} parent=11 // pred_check_branch
          %189 = sbr.rel (%p187) target = $region16
        $region15: #{tpu_custom_call.1} parent=11 // pred_region
          _
        $region16: #{tpu_custom_call.1} parent=11 // pred_fallthru
          _
        // Predicated region
        $region17: #{tpu_custom_call.1} parent=11 // pred_check
          %p190 = pneg %p83
        $region18: #{tpu_custom_call.1} parent=11 // pred_check_branch
          %192 = sbr.rel (%p190) target = $region20
        $region19: #{tpu_custom_call.1} parent=11 // pred_region
          _
        $region20: #{tpu_custom_call.1} parent=11 // pred_fallthru
          _
        // Predicated region
        $region21: #{tpu_custom_call.1} parent=11 // pred_check
          %p193 = pneg %p104
        $region22: #{tpu_custom_call.1} parent=11 // pred_check_branch
          %195 = sbr.rel (%p193) target = $region24
        $region23: #{tpu_custom_call.1} parent=11 // pred_region
          _
        $region24: #{tpu_custom_call.1} parent=11 // pred_fallthru
          _
        // Predicated region
        $region25: #{tpu_custom_call.1} parent=11 // pred_check
          %p196 = pneg %p125
        $region26: #{tpu_custom_call.1} parent=11 // pred_check_branch
          %198 = sbr.rel (%p196) target = $region28
        $region27: #{tpu_custom_call.1} parent=11 // pred_region
          _
        $region28: #{tpu_custom_call.1} parent=11 // pred_fallthru
          _
        // Predicated region
        $region29: #{tpu_custom_call.1} parent=11 // pred_check
          %p199 = pneg %p146
        $region30: #{tpu_custom_call.1} parent=11 // pred_check_branch
          %201 = sbr.rel (%p199) target = $region32
        $region31: #{tpu_custom_call.1} parent=11 // pred_region
          _
        $region32: #{tpu_custom_call.1} parent=11 // pred_fallthru
          _
      $region12: #{tpu_custom_call.1} parent=5 // pred_fallthru
        _
      %p202 = scmp.lt.s32.totalorder %s15, 2
      // Predicated region
      $region33: #{tpu_custom_call.1} parent=5 // pred_check
        %p203 = pneg %p202
      $region34: #{tpu_custom_call.1} parent=5 // pred_check_branch
        %205 = sbr.rel (%p203) target = $region36
      $region35: #{tpu_custom_call.1} parent=5 // pred_region
        // Predicated region
        $region37: #{tpu_custom_call.1} parent=35 // pred_check
          %p206 = pneg %p35
        $region38: #{tpu_custom_call.1} parent=35 // pred_check_branch
          %208 = sbr.rel (%p206) target = $region40
        $region39: #{tpu_custom_call.1} parent=35 // pred_region
          %p209 = scmp.lt.s32.totalorder %s15, 1
          %s210 = scalar_select %p209, %s15, 1
          %s211 = smul.addr %s210, 3
          %s212 = smul.addr %s211, 4
          %s213 = scalar_lea.vmem %s0, %s212
        $region40: #{tpu_custom_call.1} parent=35 // pred_fallthru
          _
      $region36: #{tpu_custom_call.1} parent=5 // pred_fallthru
        _
      %p214 = scmp.le.s32.totalorder 1, %s15
      %p215 = scmp.lt.s32.totalorder %s15, 3
      %p216 = pnand %p214, %p215
      %p217 = pneg %p216
      // Predicated region
      $region41: #{tpu_custom_call.1} parent=5 // pred_check
        _
      $region42: #{tpu_custom_call.1} parent=5 // pred_check_branch
        %219 = sbr.rel (%p216) target = $region44
      $region43: #{tpu_custom_call.1} parent=5 // pred_region
        %s220 = ssub.s32 %s15, 1
        %p221 = scmp.lt.s32.totalorder %s20, 1
        %s222 = scalar_select %p221, %s20, 1
        %s223 = smul.addr %s222, 3
        %s224 = smul.addr %s223, 4
        %s225 = scalar_lea.vmem %s0, %s224
        %p226 = pneg %p41
        %p227 = pneg %p38
        %p228 = pneg %p62
        %p229 = pneg %p59
        %p230 = pneg %p83
        %p231 = pneg %p80
        %p232 = pneg %p104
        %p233 = pneg %p101
        %p234 = pneg %p125
        %p235 = pneg %p122
        %p236 = pneg %p146
        %p237 = pneg %p143
        %p238 = pneg %p172
        %p239 = pneg %p169
        %s240 = sand.u32 %s159, 1
        %s241 = scalar_lea.sflag [#allocation3], %s240
        %s242 = sand.u32 %s159, 1
        %s243 = scalar_lea.vmem [#allocation2], %s242
        %p244 = scmp.lt.s32.totalorder %s20, 1
        %s245 = scalar_select %p244, %s20, 1
        %s246 = smul.addr %s245, 3
        %s247 = smul.addr %s246, 4
        %s248 = scalar_lea.vmem %s0, %s247
        %v249 = vld [vmem:[%s1] sm:$0xff]
        %v250 = vld [vmem:[%s248] sm:$0x77]
        %v251 = vld [vmem:[%s248 + $0x8] sm:$0x7]
        %253 = vrot.lane.b32.xlu0 %v249, 125
        %v254 = vpop.permute.xlu0 %253
        %v257 = vcombine.high %v250, %v250
        %258 = vrot.lane.b32.xlu0 %v250, 127
        %v259 = vpop.permute.xlu0 %258
        %260 = vrot.lane.b32.xlu0 %v257, 127
        %v261 = vpop.permute.xlu0 %260
        %262 = vrot.lane.b32.xlu0 %v251, 127
        %v263 = vpop.permute.xlu0 %262
        %vm264 = vcmask 1039360
        %v265 = vsel %vm264, %v259, %v261
        %v266 = vsel %vm264, %v261, %v263
        %vm267 = vcmask 23552
        %v268 = vsel %vm267, %v254, 0
        %vm270 = vcmask 1042432
        %v271 = vsel %vm270, %v265, 0
        %v273 = vsel %vm270, %v266, 0
        %v275 = vsel %vm270, %v263, 0
        %277 = vmatprep.subr.mxu0 0.0
        %278 = vmatpush1.msra.mxu0 0.0
        %279 = vmatprep.subr.mxu0 0.0
        %280 = vmatpush1.msra.mxu0 0.0
        %281 = vmatprep.subr.mxu0 0.0
        %282 = vmatpush1.msra.mxu0 0.0
        %283 = vmatprep.subr.mxu0 0.0
        %284 = vmatpush1.msra.mxu0 0.0
        %285 = vmatprep.subr.mxu0 0.0
        %286 = vmatpush1.msra.mxu0 0.0
        %287 = vmatprep.subr.mxu0 0.0
        %288 = vmatpush1.msra.mxu0 0.0
        %289 = vmatprep.subr.mxu0 0.0
        %290 = vmatpush1.msra.mxu0 0.0
        %291 = vmatprep.subr.mxu0 0.0
        %292 = vmatpush1.msra.mxu0 0.0
        %293 = vmatprep.subr.mxu0 0.0
        %294 = vmatpush1.msra.mxu0 0.0
        %295 = vmatprep.subr.mxu0 0.0
        %296 = vmatpush1.msra.mxu0 0.0
        %297 = vmatprep.subr.mxu0 0.0
        %298 = vmatpush1.msra.mxu0 0.0
        %299 = vmatprep.subr.mxu0 0.0
        %300 = vmatpush1.msra.mxu0 0.0
        %301 = vmatprep.subr.mxu0 0.0
        %302 = vmatpush1.msra.mxu0 0.0
        %303 = vmatprep.subr.mxu0 0.0
        %304 = vmatpush1.msra.mxu0 0.0
        %305 = vmatprep.subr.mxu0 0.0
        %306 = vmatpush1.msra.mxu0 0.0
        %307 = vmatprep.subr.mxu0 %v273
        %308 = vmatpush1.msra.mxu0 %v271
        %309 = vmatprep.subr.mxu0 0.0
        %310 = vmatpush2.msra.mxu0 0.0
        %311 = vmatprep.subr.mxu0 0.0
        %312 = vmatpush2.msra.mxu0 0.0
        %313 = vmatprep.subr.mxu0 0.0
        %314 = vmatpush2.msra.mxu0 0.0
        %315 = vmatprep.subr.mxu0 0.0
        %316 = vmatpush2.msra.mxu0 0.0
        %317 = vmatprep.subr.mxu0 0.0
        %318 = vmatpush2.msra.mxu0 0.0
        %319 = vmatprep.subr.mxu0 0.0
        %320 = vmatpush2.msra.mxu0 0.0
        %321 = vmatprep.subr.mxu0 0.0
        %322 = vmatpush2.msra.mxu0 0.0
        %323 = vmatprep.subr.mxu0 0.0
        %324 = vmatpush2.msra.mxu0 0.0
        %325 = vmatprep.subr.mxu0 0.0
        %326 = vmatpush2.msra.mxu0 0.0
        %327 = vmatprep.subr.mxu0 0.0
        %328 = vmatpush2.msra.mxu0 0.0
        %329 = vmatprep.subr.mxu0 0.0
        %330 = vmatpush2.msra.mxu0 0.0
        %331 = vmatprep.subr.mxu0 0.0
        %332 = vmatpush2.msra.mxu0 0.0
        %333 = vmatprep.subr.mxu0 0.0
        %334 = vmatpush2.msra.mxu0 0.0
        %335 = vmatprep.subr.mxu0 0.0
        %336 = vmatpush2.msra.mxu0 0.0
        %337 = vmatprep.subr.mxu0 0.0
        %338 = vmatpush2.msra.mxu0 0.0
        %339 = vmatprep.subr.mxu0 0.0
        %340 = vmatpush2.msra.mxu0 0.0
        %341 = vmatprep.mubr.f32.mxu0 0.0
        %342 = vmatmul.mubr.f32.gmra.mxu0 %v268
        %v343 = vpop.f32.mrf.mxu0
        %v344 = vadd.f32 0.0, %v343
        %v345 = vpop.f32.mrf.mxu0
        %v346 = vadd.f32 0.0, %v345
        %347 = vdwg.mxu0
        %348 = vmatprep.subr.mxu0 0.0
        %349 = vmatpush1.msra.mxu0 0.0
        %350 = vmatprep.subr.mxu0 0.0
        %351 = vmatpush1.msra.mxu0 0.0
        %352 = vmatprep.subr.mxu0 0.0
        %353 = vmatpush1.msra.mxu0 0.0
        %354 = vmatprep.subr.mxu0 0.0
        %355 = vmatpush1.msra.mxu0 0.0
        %356 = vmatprep.subr.mxu0 0.0
        %357 = vmatpush1.msra.mxu0 0.0
        %358 = vmatprep.subr.mxu0 0.0
        %359 = vmatpush1.msra.mxu0 0.0
        %360 = vmatprep.subr.mxu0 0.0
        %361 = vmatpush1.msra.mxu0 0.0
        %362 = vmatprep.subr.mxu0 0.0
        %363 = vmatpush1.msra.mxu0 0.0
        %364 = vmatprep.subr.mxu0 0.0
        %365 = vmatpush1.msra.mxu0 0.0
        %366 = vmatprep.subr.mxu0 0.0
        %367 = vmatpush1.msra.mxu0 0.0
        %368 = vmatprep.subr.mxu0 0.0
        %369 = vmatpush1.msra.mxu0 0.0
        %370 = vmatprep.subr.mxu0 0.0
        %371 = vmatpush1.msra.mxu0 0.0
        %372 = vmatprep.subr.mxu0 0.0
        %373 = vmatpush1.msra.mxu0 0.0
        %374 = vmatprep.subr.mxu0 0.0
        %375 = vmatpush1.msra.mxu0 0.0
        %376 = vmatprep.subr.mxu0 0.0
        %377 = vmatpush1.msra.mxu0 0.0
        %378 = vmatprep.subr.mxu0 0.0
        %379 = vmatpush1.msra.mxu0 %v275
        %380 = vmatprep.subr.mxu0 0.0
        %381 = vmatpush2.msra.mxu0 0.0
        %382 = vmatprep.subr.mxu0 0.0
        %383 = vmatpush2.msra.mxu0 0.0
        %384 = vmatprep.subr.mxu0 0.0
        %385 = vmatpush2.msra.mxu0 0.0
        %386 = vmatprep.subr.mxu0 0.0
        %387 = vmatpush2.msra.mxu0 0.0
        %388 = vmatprep.subr.mxu0 0.0
        %389 = vmatpush2.msra.mxu0 0.0
        %390 = vmatprep.subr.mxu0 0.0
        %391 = vmatpush2.msra.mxu0 0.0
        %392 = vmatprep.subr.mxu0 0.0
        %393 = vmatpush2.msra.mxu0 0.0
        %394 = vmatprep.subr.mxu0 0.0
        %395 = vmatpush2.msra.mxu0 0.0
        %396 = vmatprep.subr.mxu0 0.0
        %397 = vmatpush2.msra.mxu0 0.0
        %398 = vmatprep.subr.mxu0 0.0
        %399 = vmatpush2.msra.mxu0 0.0
        %400 = vmatprep.subr.mxu0 0.0
        %401 = vmatpush2.msra.mxu0 0.0
        %402 = vmatprep.subr.mxu0 0.0
        %403 = vmatpush2.msra.mxu0 0.0
        %404 = vmatprep.subr.mxu0 0.0
        %405 = vmatpush2.msra.mxu0 0.0
        %406 = vmatprep.subr.mxu0 0.0
        %407 = vmatpush2.msra.mxu0 0.0
        %408 = vmatprep.subr.mxu0 0.0
        %409 = vmatpush2.msra.mxu0 0.0
        %410 = vmatprep.subr.mxu0 0.0
        %411 = vmatpush2.msra.mxu0 0.0
        %412 = vmatprep.mubr.f32.mxu0 0.0
        %413 = vmatmul.mubr.f32.gmra.mxu0 %v268
        %v414 = vpop.f32.mrf.mxu0
        %v415 = vadd.f32 0.0, %v414
        %v416 = vpop.f32.mrf.mxu0
        %417 = vdwg.mxu0
        %v418 = vsel %vm267, %v249, 0
        %v420 = vsel %vm270, %v250, 0
        %v422 = vsel %vm270, %v257, 0
        %v424 = vsel %vm270, %v251, 0
        %426 = vmatprep.subr.mxu0 0.0
        %427 = vmatpush1.msra.mxu0 0.0
        %428 = vmatprep.subr.mxu0 0.0
        %429 = vmatpush1.msra.mxu0 0.0
        %430 = vmatprep.subr.mxu0 0.0
        %431 = vmatpush1.msra.mxu0 0.0
        %432 = vmatprep.subr.mxu0 0.0
        %433 = vmatpush1.msra.mxu0 0.0
        %434 = vmatprep.subr.mxu0 0.0
        %435 = vmatpush1.msra.mxu0 0.0
        %436 = vmatprep.subr.mxu0 0.0
        %437 = vmatpush1.msra.mxu0 0.0
        %438 = vmatprep.subr.mxu0 0.0
        %439 = vmatpush1.msra.mxu0 0.0
        %440 = vmatprep.subr.mxu0 0.0
        %441 = vmatpush1.msra.mxu0 0.0
        %442 = vmatprep.subr.mxu0 0.0
        %443 = vmatpush1.msra.mxu0 0.0
        %444 = vmatprep.subr.mxu0 0.0
        %445 = vmatpush1.msra.mxu0 0.0
        %446 = vmatprep.subr.mxu0 0.0
        %447 = vmatpush1.msra.mxu0 0.0
        %448 = vmatprep.subr.mxu0 0.0
        %449 = vmatpush1.msra.mxu0 0.0
        %450 = vmatprep.subr.mxu0 0.0
        %451 = vmatpush1.msra.mxu0 0.0
        %452 = vmatprep.subr.mxu0 0.0
        %453 = vmatpush1.msra.mxu0 0.0
        %454 = vmatprep.subr.mxu0 0.0
        %455 = vmatpush1.msra.mxu0 0.0
        %456 = vmatprep.subr.mxu0 %v422
        %457 = vmatpush1.msra.mxu0 %v420
        %458 = vmatprep.subr.mxu0 0.0
        %459 = vmatpush2.msra.mxu0 0.0
        %460 = vmatprep.subr.mxu0 0.0
        %461 = vmatpush2.msra.mxu0 0.0
        %462 = vmatprep.subr.mxu0 0.0
        %463 = vmatpush2.msra.mxu0 0.0
        %464 = vmatprep.subr.mxu0 0.0
        %465 = vmatpush2.msra.mxu0 0.0
        %466 = vmatprep.subr.mxu0 0.0
        %467 = vmatpush2.msra.mxu0 0.0
        %468 = vmatprep.subr.mxu0 0.0
        %469 = vmatpush2.msra.mxu0 0.0
        %470 = vmatprep.subr.mxu0 0.0
        %471 = vmatpush2.msra.mxu0 0.0
        %472 = vmatprep.subr.mxu0 0.0
        %473 = vmatpush2.msra.mxu0 0.0
        %474 = vmatprep.subr.mxu0 0.0
        %475 = vmatpush2.msra.mxu0 0.0
        %476 = vmatprep.subr.mxu0 0.0
        %477 = vmatpush2.msra.mxu0 0.0
        %478 = vmatprep.subr.mxu0 0.0
        %479 = vmatpush2.msra.mxu0 0.0
        %480 = vmatprep.subr.mxu0 0.0
        %481 = vmatpush2.msra.mxu0 0.0
        %482 = vmatprep.subr.mxu0 0.0
        %483 = vmatpush2.msra.mxu0 0.0
        %484 = vmatprep.subr.mxu0 0.0
        %485 = vmatpush2.msra.mxu0 0.0
        %486 = vmatprep.subr.mxu0 0.0
        %487 = vmatpush2.msra.mxu0 0.0
        %488 = vmatprep.subr.mxu0 0.0
        %489 = vmatpush2.msra.mxu0 0.0
        %490 = vmatprep.mubr.f32.mxu0 0.0
        %491 = vmatmul.mubr.f32.gmra.mxu0 %v418
        %v492 = vpop.f32.mrf.mxu0
        %v493 = vadd.f32 %v344, %v492
        %v494 = vpop.f32.mrf.mxu0
        %v495 = vadd.f32 %v346, %v494
        %496 = vdwg.mxu0
        %497 = vmatprep.subr.mxu0 0.0
        %498 = vmatpush1.msra.mxu0 0.0
        %499 = vmatprep.subr.mxu0 0.0
        %500 = vmatpush1.msra.mxu0 0.0
        %501 = vmatprep.subr.mxu0 0.0
        %502 = vmatpush1.msra.mxu0 0.0
        %503 = vmatprep.subr.mxu0 0.0
        %504 = vmatpush1.msra.mxu0 0.0
        %505 = vmatprep.subr.mxu0 0.0
        %506 = vmatpush1.msra.mxu0 0.0
        %507 = vmatprep.subr.mxu0 0.0
        %508 = vmatpush1.msra.mxu0 0.0
        %509 = vmatprep.subr.mxu0 0.0
        %510 = vmatpush1.msra.mxu0 0.0
        %511 = vmatprep.subr.mxu0 0.0
        %512 = vmatpush1.msra.mxu0 0.0
        %513 = vmatprep.subr.mxu0 0.0
        %514 = vmatpush1.msra.mxu0 0.0
        %515 = vmatprep.subr.mxu0 0.0
        %516 = vmatpush1.msra.mxu0 0.0
        %517 = vmatprep.subr.mxu0 0.0
        %518 = vmatpush1.msra.mxu0 0.0
        %519 = vmatprep.subr.mxu0 0.0
        %520 = vmatpush1.msra.mxu0 0.0
        %521 = vmatprep.subr.mxu0 0.0
        %522 = vmatpush1.msra.mxu0 0.0
        %523 = vmatprep.subr.mxu0 0.0
        %524 = vmatpush1.msra.mxu0 0.0
        %525 = vmatprep.subr.mxu0 0.0
        %526 = vmatpush1.msra.mxu0 0.0
        %527 = vmatprep.subr.mxu0 0.0
        %528 = vmatpush1.msra.mxu0 %v424
        %529 = vmatprep.subr.mxu0 0.0
        %530 = vmatpush2.msra.mxu0 0.0
        %531 = vmatprep.subr.mxu0 0.0
        %532 = vmatpush2.msra.mxu0 0.0
        %533 = vmatprep.subr.mxu0 0.0
        %534 = vmatpush2.msra.mxu0 0.0
        %535 = vmatprep.subr.mxu0 0.0
        %536 = vmatpush2.msra.mxu0 0.0
        %537 = vmatprep.subr.mxu0 0.0
        %538 = vmatpush2.msra.mxu0 0.0
        %539 = vmatprep.subr.mxu0 0.0
        %540 = vmatpush2.msra.mxu0 0.0
        %541 = vmatprep.subr.mxu0 0.0
        %542 = vmatpush2.msra.mxu0 0.0
        %543 = vmatprep.subr.mxu0 0.0
        %544 = vmatpush2.msra.mxu0 0.0
        %545 = vmatprep.subr.mxu0 0.0
        %546 = vmatpush2.msra.mxu0 0.0
        %547 = vmatprep.subr.mxu0 0.0
        %548 = vmatpush2.msra.mxu0 0.0
        %549 = vmatprep.subr.mxu0 0.0
        %550 = vmatpush2.msra.mxu0 0.0
        %551 = vmatprep.subr.mxu0 0.0
        %552 = vmatpush2.msra.mxu0 0.0
        %553 = vmatprep.subr.mxu0 0.0
        %554 = vmatpush2.msra.mxu0 0.0
        %555 = vmatprep.subr.mxu0 0.0
        %556 = vmatpush2.msra.mxu0 0.0
        %557 = vmatprep.subr.mxu0 0.0
        %558 = vmatpush2.msra.mxu0 0.0
        %559 = vmatprep.subr.mxu0 0.0
        %560 = vmatpush2.msra.mxu0 0.0
        %561 = vmatprep.mubr.f32.mxu0 0.0
        %562 = vmatmul.mubr.f32.gmra.mxu0 %v418
        %v563 = vpop.f32.mrf.mxu0
        %v564 = vadd.f32 %v415, %v563
        %v565 = vpop.f32.mrf.mxu0
        %566 = vdwg.mxu0
        %v567 = vld [vmem:[%s1] sm:$0xff]
        %v568 = vld [vmem:[%s248] sm:$0x77]
        %v569 = vld [vmem:[%s248 + $0x8] sm:$0x7]
        %571 = vrot.lane.b32.xlu0 %v567, 122
        %v572 = vpop.permute.xlu0 %571
        %v575 = vcombine.high %v568, %v568
        %576 = vrot.lane.b32.xlu0 %v568, 126
        %v577 = vpop.permute.xlu0 %576
        %578 = vrot.lane.b32.xlu0 %v575, 126
        %v579 = vpop.permute.xlu0 %578
        %580 = vrot.lane.b32.xlu0 %v569, 126
        %v581 = vpop.permute.xlu0 %580
        %vm582 = vcmask 1031168
        %v583 = vsel %vm582, %v577, %v579
        %v584 = vsel %vm582, %v579, %v581
        %v585 = vsel %vm267, %v572, 0
        %v587 = vsel %vm270, %v583, 0
        %v589 = vsel %vm270, %v584, 0
        %v591 = vsel %vm270, %v581, 0
        %593 = vmatprep.subr.mxu0 0.0
        %594 = vmatpush1.msra.mxu0 0.0
        %595 = vmatprep.subr.mxu0 0.0
        %596 = vmatpush1.msra.mxu0 0.0
        %597 = vmatprep.subr.mxu0 0.0
        %598 = vmatpush1.msra.mxu0 0.0
        %599 = vmatprep.subr.mxu0 0.0
        %600 = vmatpush1.msra.mxu0 0.0
        %601 = vmatprep.subr.mxu0 0.0
        %602 = vmatpush1.msra.mxu0 0.0
        %603 = vmatprep.subr.mxu0 0.0
        %604 = vmatpush1.msra.mxu0 0.0
        %605 = vmatprep.subr.mxu0 0.0
        %606 = vmatpush1.msra.mxu0 0.0
        %607 = vmatprep.subr.mxu0 0.0
        %608 = vmatpush1.msra.mxu0 0.0
        %609 = vmatprep.subr.mxu0 0.0
        %610 = vmatpush1.msra.mxu0 0.0
        %611 = vmatprep.subr.mxu0 0.0
        %612 = vmatpush1.msra.mxu0 0.0
        %613 = vmatprep.subr.mxu0 0.0
        %614 = vmatpush1.msra.mxu0 0.0
        %615 = vmatprep.subr.mxu0 0.0
        %616 = vmatpush1.msra.mxu0 0.0
        %617 = vmatprep.subr.mxu0 0.0
        %618 = vmatpush1.msra.mxu0 0.0
        %619 = vmatprep.subr.mxu0 0.0
        %620 = vmatpush1.msra.mxu0 0.0
        %621 = vmatprep.subr.mxu0 0.0
        %622 = vmatpush1.msra.mxu0 0.0
        %623 = vmatprep.subr.mxu0 %v589
        %624 = vmatpush1.msra.mxu0 %v587
        %625 = vmatprep.subr.mxu0 0.0
        %626 = vmatpush2.msra.mxu0 0.0
        %627 = vmatprep.subr.mxu0 0.0
        %628 = vmatpush2.msra.mxu0 0.0
        %629 = vmatprep.subr.mxu0 0.0
        %630 = vmatpush2.msra.mxu0 0.0
        %631 = vmatprep.subr.mxu0 0.0
        %632 = vmatpush2.msra.mxu0 0.0
        %633 = vmatprep.subr.mxu0 0.0
        %634 = vmatpush2.msra.mxu0 0.0
        %635 = vmatprep.subr.mxu0 0.0
        %636 = vmatpush2.msra.mxu0 0.0
        %637 = vmatprep.subr.mxu0 0.0
        %638 = vmatpush2.msra.mxu0 0.0
        %639 = vmatprep.subr.mxu0 0.0
        %640 = vmatpush2.msra.mxu0 0.0
        %641 = vmatprep.subr.mxu0 0.0
        %642 = vmatpush2.msra.mxu0 0.0
        %643 = vmatprep.subr.mxu0 0.0
        %644 = vmatpush2.msra.mxu0 0.0
        %645 = vmatprep.subr.mxu0 0.0
        %646 = vmatpush2.msra.mxu0 0.0
        %647 = vmatprep.subr.mxu0 0.0
        %648 = vmatpush2.msra.mxu0 0.0
        %649 = vmatprep.subr.mxu0 0.0
        %650 = vmatpush2.msra.mxu0 0.0
        %651 = vmatprep.subr.mxu0 0.0
        %652 = vmatpush2.msra.mxu0 0.0
        %653 = vmatprep.subr.mxu0 0.0
        %654 = vmatpush2.msra.mxu0 0.0
        %655 = vmatprep.subr.mxu0 0.0
        %656 = vmatpush2.msra.mxu0 0.0
        %657 = vmatprep.mubr.f32.mxu0 0.0
        %658 = vmatmul.mubr.f32.gmra.mxu0 %v585
        %v659 = vpop.f32.mrf.mxu0
        %v660 = vadd.f32 0.0, %v659
        %v661 = vpop.f32.mrf.mxu0
        %v662 = vadd.f32 0.0, %v661
        %663 = vdwg.mxu0
        %664 = vmatprep.subr.mxu0 0.0
        %665 = vmatpush1.msra.mxu0 0.0
        %666 = vmatprep.subr.mxu0 0.0
        %667 = vmatpush1.msra.mxu0 0.0
        %668 = vmatprep.subr.mxu0 0.0
        %669 = vmatpush1.msra.mxu0 0.0
        %670 = vmatprep.subr.mxu0 0.0
        %671 = vmatpush1.msra.mxu0 0.0
        %672 = vmatprep.subr.mxu0 0.0
        %673 = vmatpush1.msra.mxu0 0.0
        %674 = vmatprep.subr.mxu0 0.0
        %675 = vmatpush1.msra.mxu0 0.0
        %676 = vmatprep.subr.mxu0 0.0
        %677 = vmatpush1.msra.mxu0 0.0
        %678 = vmatprep.subr.mxu0 0.0
        %679 = vmatpush1.msra.mxu0 0.0
        %680 = vmatprep.subr.mxu0 0.0
        %681 = vmatpush1.msra.mxu0 0.0
        %682 = vmatprep.subr.mxu0 0.0
        %683 = vmatpush1.msra.mxu0 0.0
        %684 = vmatprep.subr.mxu0 0.0
        %685 = vmatpush1.msra.mxu0 0.0
        %686 = vmatprep.subr.mxu0 0.0
        %687 = vmatpush1.msra.mxu0 0.0
        %688 = vmatprep.subr.mxu0 0.0
        %689 = vmatpush1.msra.mxu0 0.0
        %690 = vmatprep.subr.mxu0 0.0
        %691 = vmatpush1.msra.mxu0 0.0
        %692 = vmatprep.subr.mxu0 0.0
        %693 = vmatpush1.msra.mxu0 0.0
        %694 = vmatprep.subr.mxu0 0.0
        %695 = vmatpush1.msra.mxu0 %v591
        %696 = vmatprep.subr.mxu0 0.0
        %697 = vmatpush2.msra.mxu0 0.0
        %698 = vmatprep.subr.mxu0 0.0
        %699 = vmatpush2.msra.mxu0 0.0
        %700 = vmatprep.subr.mxu0 0.0
        %701 = vmatpush2.msra.mxu0 0.0
        %702 = vmatprep.subr.mxu0 0.0
        %703 = vmatpush2.msra.mxu0 0.0
        %704 = vmatprep.subr.mxu0 0.0
        %705 = vmatpush2.msra.mxu0 0.0
        %706 = vmatprep.subr.mxu0 0.0
        %707 = vmatpush2.msra.mxu0 0.0
        %708 = vmatprep.subr.mxu0 0.0
        %709 = vmatpush2.msra.mxu0 0.0
        %710 = vmatprep.subr.mxu0 0.0
        %711 = vmatpush2.msra.mxu0 0.0
        %712 = vmatprep.subr.mxu0 0.0
        %713 = vmatpush2.msra.mxu0 0.0
        %714 = vmatprep.subr.mxu0 0.0
        %715 = vmatpush2.msra.mxu0 0.0
        %716 = vmatprep.subr.mxu0 0.0
        %717 = vmatpush2.msra.mxu0 0.0
        %718 = vmatprep.subr.mxu0 0.0
        %719 = vmatpush2.msra.mxu0 0.0
        %720 = vmatprep.subr.mxu0 0.0
        %721 = vmatpush2.msra.mxu0 0.0
        %722 = vmatprep.subr.mxu0 0.0
        %723 = vmatpush2.msra.mxu0 0.0
        %724 = vmatprep.subr.mxu0 0.0
        %725 = vmatpush2.msra.mxu0 0.0
        %726 = vmatprep.subr.mxu0 0.0
        %727 = vmatpush2.msra.mxu0 0.0
        %728 = vmatprep.mubr.f32.mxu0 0.0
        %729 = vmatmul.mubr.f32.gmra.mxu0 %v585
        %v730 = vpop.f32.mrf.mxu0
        %v731 = vadd.f32 0.0, %v730
        %v732 = vpop.f32.mrf.mxu0
        %733 = vdwg.mxu0
        %v734 = vadd.f32 %v493, %v660
        %v735 = vadd.f32 %v495, %v662
        %v736 = vadd.f32 %v564, %v731
        %v737 = vld [vmem:[%s1] sm:$0xff]
        %v738 = vld [vmem:[%s248] sm:$0x77]
        %v739 = vld [vmem:[%s248 + $0x8] sm:$0x7]
        %741 = vrot.lane.b32.xlu0 %v737, 119
        %v742 = vpop.permute.xlu0 %741
        %v745 = vcombine.high %v738, %v738
        %746 = vrot.lane.b32.xlu0 %v738, 110
        %v747 = vpop.permute.xlu0 %746
        %748 = vrot.lane.b32.xlu0 %v745, 110
        %v749 = vpop.permute.xlu0 %748
        %750 = vrot.lane.b32.xlu0 %v739, 110
        %v751 = vpop.permute.xlu0 %750
        %vm752 = vcmask 900096
        %v753 = vsel %vm752, %v747, %v749
        %v754 = vsel %vm752, %v749, %v751
        %v755 = vsel %vm267, %v742, 0
        %v757 = vsel %vm270, %v753, 0
        %v759 = vsel %vm270, %v754, 0
        %v761 = vsel %vm270, %v751, 0
        %763 = vmatprep.subr.mxu0 0.0
        %764 = vmatpush1.msra.mxu0 0.0
        %765 = vmatprep.subr.mxu0 0.0
        %766 = vmatpush1.msra.mxu0 0.0
        %767 = vmatprep.subr.mxu0 0.0
        %768 = vmatpush1.msra.mxu0 0.0
        %769 = vmatprep.subr.mxu0 0.0
        %770 = vmatpush1.msra.mxu0 0.0
        %771 = vmatprep.subr.mxu0 0.0
        %772 = vmatpush1.msra.mxu0 0.0
        %773 = vmatprep.subr.mxu0 0.0
        %774 = vmatpush1.msra.mxu0 0.0
        %775 = vmatprep.subr.mxu0 0.0
        %776 = vmatpush1.msra.mxu0 0.0
        %777 = vmatprep.subr.mxu0 0.0
        %778 = vmatpush1.msra.mxu0 0.0
        %779 = vmatprep.subr.mxu0 0.0
        %780 = vmatpush1.msra.mxu0 0.0
        %781 = vmatprep.subr.mxu0 0.0
        %782 = vmatpush1.msra.mxu0 0.0
        %783 = vmatprep.subr.mxu0 0.0
        %784 = vmatpush1.msra.mxu0 0.0
        %785 = vmatprep.subr.mxu0 0.0
        %786 = vmatpush1.msra.mxu0 0.0
        %787 = vmatprep.subr.mxu0 0.0
        %788 = vmatpush1.msra.mxu0 0.0
        %789 = vmatprep.subr.mxu0 0.0
        %790 = vmatpush1.msra.mxu0 0.0
        %791 = vmatprep.subr.mxu0 0.0
        %792 = vmatpush1.msra.mxu0 0.0
        %793 = vmatprep.subr.mxu0 %v759
        %794 = vmatpush1.msra.mxu0 %v757
        %795 = vmatprep.subr.mxu0 0.0
        %796 = vmatpush2.msra.mxu0 0.0
        %797 = vmatprep.subr.mxu0 0.0
        %798 = vmatpush2.msra.mxu0 0.0
        %799 = vmatprep.subr.mxu0 0.0
        %800 = vmatpush2.msra.mxu0 0.0
        %801 = vmatprep.subr.mxu0 0.0
        %802 = vmatpush2.msra.mxu0 0.0
        %803 = vmatprep.subr.mxu0 0.0
        %804 = vmatpush2.msra.mxu0 0.0
        %805 = vmatprep.subr.mxu0 0.0
        %806 = vmatpush2.msra.mxu0 0.0
        %807 = vmatprep.subr.mxu0 0.0
        %808 = vmatpush2.msra.mxu0 0.0
        %809 = vmatprep.subr.mxu0 0.0
        %810 = vmatpush2.msra.mxu0 0.0
        %811 = vmatprep.subr.mxu0 0.0
        %812 = vmatpush2.msra.mxu0 0.0
        %813 = vmatprep.subr.mxu0 0.0
        %814 = vmatpush2.msra.mxu0 0.0
        %815 = vmatprep.subr.mxu0 0.0
        %816 = vmatpush2.msra.mxu0 0.0
        %817 = vmatprep.subr.mxu0 0.0
        %818 = vmatpush2.msra.mxu0 0.0
        %819 = vmatprep.subr.mxu0 0.0
        %820 = vmatpush2.msra.mxu0 0.0
        %821 = vmatprep.subr.mxu0 0.0
        %822 = vmatpush2.msra.mxu0 0.0
        %823 = vmatprep.subr.mxu0 0.0
        %824 = vmatpush2.msra.mxu0 0.0
        %825 = vmatprep.subr.mxu0 0.0
        %826 = vmatpush2.msra.mxu0 0.0
        %827 = vmatprep.mubr.f32.mxu0 0.0
        %828 = vmatmul.mubr.f32.gmra.mxu0 %v755
        %v829 = vpop.f32.mrf.mxu0
        %v830 = vadd.f32 0.0, %v829
        %v831 = vpop.f32.mrf.mxu0
        %v832 = vadd.f32 0.0, %v831
        %833 = vdwg.mxu0
        %834 = vmatprep.subr.mxu0 0.0
        %835 = vmatpush1.msra.mxu0 0.0
        %836 = vmatprep.subr.mxu0 0.0
        %837 = vmatpush1.msra.mxu0 0.0
        %838 = vmatprep.subr.mxu0 0.0
        %839 = vmatpush1.msra.mxu0 0.0
        %840 = vmatprep.subr.mxu0 0.0
        %841 = vmatpush1.msra.mxu0 0.0
        %842 = vmatprep.subr.mxu0 0.0
        %843 = vmatpush1.msra.mxu0 0.0
        %844 = vmatprep.subr.mxu0 0.0
        %845 = vmatpush1.msra.mxu0 0.0
        %846 = vmatprep.subr.mxu0 0.0
        %847 = vmatpush1.msra.mxu0 0.0
        %848 = vmatprep.subr.mxu0 0.0
        %849 = vmatpush1.msra.mxu0 0.0
        %850 = vmatprep.subr.mxu0 0.0
        %851 = vmatpush1.msra.mxu0 0.0
        %852 = vmatprep.subr.mxu0 0.0
        %853 = vmatpush1.msra.mxu0 0.0
        %854 = vmatprep.subr.mxu0 0.0
        %855 = vmatpush1.msra.mxu0 0.0
        %856 = vmatprep.subr.mxu0 0.0
        %857 = vmatpush1.msra.mxu0 0.0
        %858 = vmatprep.subr.mxu0 0.0
        %859 = vmatpush1.msra.mxu0 0.0
        %860 = vmatprep.subr.mxu0 0.0
        %861 = vmatpush1.msra.mxu0 0.0
        %862 = vmatprep.subr.mxu0 0.0
        %863 = vmatpush1.msra.mxu0 0.0
        %864 = vmatprep.subr.mxu0 0.0
        %865 = vmatpush1.msra.mxu0 %v761
        %866 = vmatprep.subr.mxu0 0.0
        %867 = vmatpush2.msra.mxu0 0.0
        %868 = vmatprep.subr.mxu0 0.0
        %869 = vmatpush2.msra.mxu0 0.0
        %870 = vmatprep.subr.mxu0 0.0
        %871 = vmatpush2.msra.mxu0 0.0
        %872 = vmatprep.subr.mxu0 0.0
        %873 = vmatpush2.msra.mxu0 0.0
        %874 = vmatprep.subr.mxu0 0.0
        %875 = vmatpush2.msra.mxu0 0.0
        %876 = vmatprep.subr.mxu0 0.0
        %877 = vmatpush2.msra.mxu0 0.0
        %878 = vmatprep.subr.mxu0 0.0
        %879 = vmatpush2.msra.mxu0 0.0
        %880 = vmatprep.subr.mxu0 0.0
        %881 = vmatpush2.msra.mxu0 0.0
        %882 = vmatprep.subr.mxu0 0.0
        %883 = vmatpush2.msra.mxu0 0.0
        %884 = vmatprep.subr.mxu0 0.0
        %885 = vmatpush2.msra.mxu0 0.0
        %886 = vmatprep.subr.mxu0 0.0
        %887 = vmatpush2.msra.mxu0 0.0
        %888 = vmatprep.subr.mxu0 0.0
        %889 = vmatpush2.msra.mxu0 0.0
        %890 = vmatprep.subr.mxu0 0.0
        %891 = vmatpush2.msra.mxu0 0.0
        %892 = vmatprep.subr.mxu0 0.0
        %893 = vmatpush2.msra.mxu0 0.0
        %894 = vmatprep.subr.mxu0 0.0
        %895 = vmatpush2.msra.mxu0 0.0
        %896 = vmatprep.subr.mxu0 0.0
        %897 = vmatpush2.msra.mxu0 0.0
        %898 = vmatprep.mubr.f32.mxu0 0.0
        %899 = vmatmul.mubr.f32.gmra.mxu0 %v755
        %v900 = vpop.f32.mrf.mxu0
        %v901 = vadd.f32 0.0, %v900
        %v902 = vpop.f32.mrf.mxu0
        %903 = vdwg.mxu0
        %v904 = vadd.f32 %v734, %v830
        %v905 = vadd.f32 %v735, %v832
        %v906 = vadd.f32 %v736, %v901
        %v907 = vld [vmem:[%s1] sm:$0xff]
        %v908 = vld [vmem:[%s248] sm:$0x77]
        %v909 = vld [vmem:[%s248 + $0x8] sm:$0x7]
        %911 = vrot.lane.b32.xlu0 %v907, 116
        %v912 = vpop.permute.xlu0 %911
        %v915 = vcombine.high %v908, %v908
        %916 = vrot.lane.b32.xlu0 %v908, 109
        %v917 = vpop.permute.xlu0 %916
        %918 = vrot.lane.b32.xlu0 %v915, 109
        %v919 = vpop.permute.xlu0 %918
        %920 = vrot.lane.b32.xlu0 %v909, 109
        %v921 = vpop.permute.xlu0 %920
        %vm922 = vcmask 891904
        %v923 = vsel %vm922, %v917, %v919
        %v924 = vsel %vm922, %v919, %v921
        %v925 = vsel %vm267, %v912, 0
        %v927 = vsel %vm270, %v923, 0
        %v929 = vsel %vm270, %v924, 0
        %v931 = vsel %vm270, %v921, 0
        %933 = vmatprep.subr.mxu0 0.0
        %934 = vmatpush1.msra.mxu0 0.0
        %935 = vmatprep.subr.mxu0 0.0
        %936 = vmatpush1.msra.mxu0 0.0
        %937 = vmatprep.subr.mxu0 0.0
        %938 = vmatpush1.msra.mxu0 0.0
        %939 = vmatprep.subr.mxu0 0.0
        %940 = vmatpush1.msra.mxu0 0.0
        %941 = vmatprep.subr.mxu0 0.0
        %942 = vmatpush1.msra.mxu0 0.0
        %943 = vmatprep.subr.mxu0 0.0
        %944 = vmatpush1.msra.mxu0 0.0
        %945 = vmatprep.subr.mxu0 0.0
        %946 = vmatpush1.msra.mxu0 0.0
        %947 = vmatprep.subr.mxu0 0.0
        %948 = vmatpush1.msra.mxu0 0.0
        %949 = vmatprep.subr.mxu0 0.0
        %950 = vmatpush1.msra.mxu0 0.0
        %951 = vmatprep.subr.mxu0 0.0
        %952 = vmatpush1.msra.mxu0 0.0
        %953 = vmatprep.subr.mxu0 0.0
        %954 = vmatpush1.msra.mxu0 0.0
        %955 = vmatprep.subr.mxu0 0.0
        %956 = vmatpush1.msra.mxu0 0.0
        %957 = vmatprep.subr.mxu0 0.0
        %958 = vmatpush1.msra.mxu0 0.0
        %959 = vmatprep.subr.mxu0 0.0
        %960 = vmatpush1.msra.mxu0 0.0
        %961 = vmatprep.subr.mxu0 0.0
        %962 = vmatpush1.msra.mxu0 0.0
        %963 = vmatprep.subr.mxu0 %v929
        %964 = vmatpush1.msra.mxu0 %v927
        %965 = vmatprep.subr.mxu0 0.0
        %966 = vmatpush2.msra.mxu0 0.0
        %967 = vmatprep.subr.mxu0 0.0
        %968 = vmatpush2.msra.mxu0 0.0
        %969 = vmatprep.subr.mxu0 0.0
        %970 = vmatpush2.msra.mxu0 0.0
        %971 = vmatprep.subr.mxu0 0.0
        %972 = vmatpush2.msra.mxu0 0.0
        %973 = vmatprep.subr.mxu0 0.0
        %974 = vmatpush2.msra.mxu0 0.0
        %975 = vmatprep.subr.mxu0 0.0
        %976 = vmatpush2.msra.mxu0 0.0
        %977 = vmatprep.subr.mxu0 0.0
        %978 = vmatpush2.msra.mxu0 0.0
        %979 = vmatprep.subr.mxu0 0.0
        %980 = vmatpush2.msra.mxu0 0.0
        %981 = vmatprep.subr.mxu0 0.0
        %982 = vmatpush2.msra.mxu0 0.0
        %983 = vmatprep.subr.mxu0 0.0
        %984 = vmatpush2.msra.mxu0 0.0
        %985 = vmatprep.subr.mxu0 0.0
        %986 = vmatpush2.msra.mxu0 0.0
        %987 = vmatprep.subr.mxu0 0.0
        %988 = vmatpush2.msra.mxu0 0.0
        %989 = vmatprep.subr.mxu0 0.0
        %990 = vmatpush2.msra.mxu0 0.0
        %991 = vmatprep.subr.mxu0 0.0
        %992 = vmatpush2.msra.mxu0 0.0
        %993 = vmatprep.subr.mxu0 0.0
        %994 = vmatpush2.msra.mxu0 0.0
        %995 = vmatprep.subr.mxu0 0.0
        %996 = vmatpush2.msra.mxu0 0.0
        %997 = vmatprep.mubr.f32.mxu0 0.0
        %998 = vmatmul.mubr.f32.gmra.mxu0 %v925
        %v999 = vpop.f32.mrf.mxu0
        %v1000 = vadd.f32 0.0, %v999
        %v1001 = vpop.f32.mrf.mxu0
        %v1002 = vadd.f32 0.0, %v1001
        %1003 = vdwg.mxu0
        %1004 = vmatprep.subr.mxu0 0.0
        %1005 = vmatpush1.msra.mxu0 0.0
        %1006 = vmatprep.subr.mxu0 0.0
        %1007 = vmatpush1.msra.mxu0 0.0
        %1008 = vmatprep.subr.mxu0 0.0
        %1009 = vmatpush1.msra.mxu0 0.0
        %1010 = vmatprep.subr.mxu0 0.0
        %1011 = vmatpush1.msra.mxu0 0.0
        %1012 = vmatprep.subr.mxu0 0.0
        %1013 = vmatpush1.msra.mxu0 0.0
        %1014 = vmatprep.subr.mxu0 0.0
        %1015 = vmatpush1.msra.mxu0 0.0
        %1016 = vmatprep.subr.mxu0 0.0
        %1017 = vmatpush1.msra.mxu0 0.0
        %1018 = vmatprep.subr.mxu0 0.0
        %1019 = vmatpush1.msra.mxu0 0.0
        %1020 = vmatprep.subr.mxu0 0.0
        %1021 = vmatpush1.msra.mxu0 0.0
        %1022 = vmatprep.subr.mxu0 0.0
        %1023 = vmatpush1.msra.mxu0 0.0
        %1024 = vmatprep.subr.mxu0 0.0
        %1025 = vmatpush1.msra.mxu0 0.0
        %1026 = vmatprep.subr.mxu0 0.0
        %1027 = vmatpush1.msra.mxu0 0.0
        %1028 = vmatprep.subr.mxu0 0.0
        %1029 = vmatpush1.msra.mxu0 0.0
        %1030 = vmatprep.subr.mxu0 0.0
        %1031 = vmatpush1.msra.mxu0 0.0
        %1032 = vmatprep.subr.mxu0 0.0
        %1033 = vmatpush1.msra.mxu0 0.0
        %1034 = vmatprep.subr.mxu0 0.0
        %1035 = vmatpush1.msra.mxu0 %v931
        %1036 = vmatprep.subr.mxu0 0.0
        %1037 = vmatpush2.msra.mxu0 0.0
        %1038 = vmatprep.subr.mxu0 0.0
        %1039 = vmatpush2.msra.mxu0 0.0
        %1040 = vmatprep.subr.mxu0 0.0
        %1041 = vmatpush2.msra.mxu0 0.0
        %1042 = vmatprep.subr.mxu0 0.0
        %1043 = vmatpush2.msra.mxu0 0.0
        %1044 = vmatprep.subr.mxu0 0.0
        %1045 = vmatpush2.msra.mxu0 0.0
        %1046 = vmatprep.subr.mxu0 0.0
        %1047 = vmatpush2.msra.mxu0 0.0
        %1048 = vmatprep.subr.mxu0 0.0
        %1049 = vmatpush2.msra.mxu0 0.0
        %1050 = vmatprep.subr.mxu0 0.0
        %1051 = vmatpush2.msra.mxu0 0.0
        %1052 = vmatprep.subr.mxu0 0.0
        %1053 = vmatpush2.msra.mxu0 0.0
        %1054 = vmatprep.subr.mxu0 0.0
        %1055 = vmatpush2.msra.mxu0 0.0
        %1056 = vmatprep.subr.mxu0 0.0
        %1057 = vmatpush2.msra.mxu0 0.0
        %1058 = vmatprep.subr.mxu0 0.0
        %1059 = vmatpush2.msra.mxu0 0.0
        %1060 = vmatprep.subr.mxu0 0.0
        %1061 = vmatpush2.msra.mxu0 0.0
        %1062 = vmatprep.subr.mxu0 0.0
        %1063 = vmatpush2.msra.mxu0 0.0
        %1064 = vmatprep.subr.mxu0 0.0
        %1065 = vmatpush2.msra.mxu0 0.0
        %1066 = vmatprep.subr.mxu0 0.0
        %1067 = vmatpush2.msra.mxu0 0.0
        %1068 = vmatprep.mubr.f32.mxu0 0.0
        %1069 = vmatmul.mubr.f32.gmra.mxu0 %v925
        %v1070 = vpop.f32.mrf.mxu0
        %v1071 = vadd.f32 0.0, %v1070
        %v1072 = vpop.f32.mrf.mxu0
        %1073 = vdwg.mxu0
        %v1074 = vadd.f32 %v904, %v1000
        %v1075 = vadd.f32 %v905, %v1002
        %v1076 = vadd.f32 %v906, %v1071
        %v1077 = vld [vmem:[%s1] sm:$0xff]
        %v1078 = vld [vmem:[%s248] sm:$0x77]
        %v1079 = vld [vmem:[%s248 + $0x8] sm:$0x7]
        %1081 = vrot.lane.b32.xlu0 %v1077, 113
        %v1082 = vpop.permute.xlu0 %1081
        %v1085 = vcombine.high %v1078, %v1078
        %1086 = vrot.lane.b32.xlu0 %v1078, 108
        %v1087 = vpop.permute.xlu0 %1086
        %1088 = vrot.lane.b32.xlu0 %v1085, 108
        %v1089 = vpop.permute.xlu0 %1088
        %1090 = vrot.lane.b32.xlu0 %v1079, 108
        %v1091 = vpop.permute.xlu0 %1090
        %vm1092 = vcmask 883712
        %v1093 = vsel %vm1092, %v1087, %v1089
        %v1094 = vsel %vm1092, %v1089, %v1091
        %v1095 = vsel %vm267, %v1082, 0
        %v1097 = vsel %vm270, %v1093, 0
        %v1099 = vsel %vm270, %v1094, 0
        %v1101 = vsel %vm270, %v1091, 0
        %1103 = vmatprep.subr.mxu0 0.0
        %1104 = vmatpush1.msra.mxu0 0.0
        %1105 = vmatprep.subr.mxu0 0.0
        %1106 = vmatpush1.msra.mxu0 0.0
        %1107 = vmatprep.subr.mxu0 0.0
        %1108 = vmatpush1.msra.mxu0 0.0
        %1109 = vmatprep.subr.mxu0 0.0
        %1110 = vmatpush1.msra.mxu0 0.0
        %1111 = vmatprep.subr.mxu0 0.0
        %1112 = vmatpush1.msra.mxu0 0.0
        %1113 = vmatprep.subr.mxu0 0.0
        %1114 = vmatpush1.msra.mxu0 0.0
        %1115 = vmatprep.subr.mxu0 0.0
        %1116 = vmatpush1.msra.mxu0 0.0
        %1117 = vmatprep.subr.mxu0 0.0
        %1118 = vmatpush1.msra.mxu0 0.0
        %1119 = vmatprep.subr.mxu0 0.0
        %1120 = vmatpush1.msra.mxu0 0.0
        %1121 = vmatprep.subr.mxu0 0.0
        %1122 = vmatpush1.msra.mxu0 0.0
        %1123 = vmatprep.subr.mxu0 0.0
        %1124 = vmatpush1.msra.mxu0 0.0
        %1125 = vmatprep.subr.mxu0 0.0
        %1126 = vmatpush1.msra.mxu0 0.0
        %1127 = vmatprep.subr.mxu0 0.0
        %1128 = vmatpush1.msra.mxu0 0.0
        %1129 = vmatprep.subr.mxu0 0.0
        %1130 = vmatpush1.msra.mxu0 0.0
        %1131 = vmatprep.subr.mxu0 0.0
        %1132 = vmatpush1.msra.mxu0 0.0
        %1133 = vmatprep.subr.mxu0 %v1099
        %1134 = vmatpush1.msra.mxu0 %v1097
        %1135 = vmatprep.subr.mxu0 0.0
        %1136 = vmatpush2.msra.mxu0 0.0
        %1137 = vmatprep.subr.mxu0 0.0
        %1138 = vmatpush2.msra.mxu0 0.0
        %1139 = vmatprep.subr.mxu0 0.0
        %1140 = vmatpush2.msra.mxu0 0.0
        %1141 = vmatprep.subr.mxu0 0.0
        %1142 = vmatpush2.msra.mxu0 0.0
        %1143 = vmatprep.subr.mxu0 0.0
        %1144 = vmatpush2.msra.mxu0 0.0
        %1145 = vmatprep.subr.mxu0 0.0
        %1146 = vmatpush2.msra.mxu0 0.0
        %1147 = vmatprep.subr.mxu0 0.0
        %1148 = vmatpush2.msra.mxu0 0.0
        %1149 = vmatprep.subr.mxu0 0.0
        %1150 = vmatpush2.msra.mxu0 0.0
        %1151 = vmatprep.subr.mxu0 0.0
        %1152 = vmatpush2.msra.mxu0 0.0
        %1153 = vmatprep.subr.mxu0 0.0
        %1154 = vmatpush2.msra.mxu0 0.0
        %1155 = vmatprep.subr.mxu0 0.0
        %1156 = vmatpush2.msra.mxu0 0.0
        %1157 = vmatprep.subr.mxu0 0.0
        %1158 = vmatpush2.msra.mxu0 0.0
        %1159 = vmatprep.subr.mxu0 0.0
        %1160 = vmatpush2.msra.mxu0 0.0
        %1161 = vmatprep.subr.mxu0 0.0
        %1162 = vmatpush2.msra.mxu0 0.0
        %1163 = vmatprep.subr.mxu0 0.0
        %1164 = vmatpush2.msra.mxu0 0.0
        %1165 = vmatprep.subr.mxu0 0.0
        %1166 = vmatpush2.msra.mxu0 0.0
        %1167 = vmatprep.mubr.f32.mxu0 0.0
        %1168 = vmatmul.mubr.f32.gmra.mxu0 %v1095
        %v1169 = vpop.f32.mrf.mxu0
        %v1170 = vadd.f32 0.0, %v1169
        %v1171 = vpop.f32.mrf.mxu0
        %v1172 = vadd.f32 0.0, %v1171
        %1173 = vdwg.mxu0
        %1174 = vmatprep.subr.mxu0 0.0
        %1175 = vmatpush1.msra.mxu0 0.0
        %1176 = vmatprep.subr.mxu0 0.0
        %1177 = vmatpush1.msra.mxu0 0.0
        %1178 = vmatprep.subr.mxu0 0.0
        %1179 = vmatpush1.msra.mxu0 0.0
        %1180 = vmatprep.subr.mxu0 0.0
        %1181 = vmatpush1.msra.mxu0 0.0
        %1182 = vmatprep.subr.mxu0 0.0
        %1183 = vmatpush1.msra.mxu0 0.0
        %1184 = vmatprep.subr.mxu0 0.0
        %1185 = vmatpush1.msra.mxu0 0.0
        %1186 = vmatprep.subr.mxu0 0.0
        %1187 = vmatpush1.msra.mxu0 0.0
        %1188 = vmatprep.subr.mxu0 0.0
        %1189 = vmatpush1.msra.mxu0 0.0
        %1190 = vmatprep.subr.mxu0 0.0
        %1191 = vmatpush1.msra.mxu0 0.0
        %1192 = vmatprep.subr.mxu0 0.0
        %1193 = vmatpush1.msra.mxu0 0.0
        %1194 = vmatprep.subr.mxu0 0.0
        %1195 = vmatpush1.msra.mxu0 0.0
        %1196 = vmatprep.subr.mxu0 0.0
        %1197 = vmatpush1.msra.mxu0 0.0
        %1198 = vmatprep.subr.mxu0 0.0
        %1199 = vmatpush1.msra.mxu0 0.0
        %1200 = vmatprep.subr.mxu0 0.0
        %1201 = vmatpush1.msra.mxu0 0.0
        %1202 = vmatprep.subr.mxu0 0.0
        %1203 = vmatpush1.msra.mxu0 0.0
        %1204 = vmatprep.subr.mxu0 0.0
        %1205 = vmatpush1.msra.mxu0 %v1101
        %1206 = vmatprep.subr.mxu0 0.0
        %1207 = vmatpush2.msra.mxu0 0.0
        %1208 = vmatprep.subr.mxu0 0.0
        %1209 = vmatpush2.msra.mxu0 0.0
        %1210 = vmatprep.subr.mxu0 0.0
        %1211 = vmatpush2.msra.mxu0 0.0
        %1212 = vmatprep.subr.mxu0 0.0
        %1213 = vmatpush2.msra.mxu0 0.0
        %1214 = vmatprep.subr.mxu0 0.0
        %1215 = vmatpush2.msra.mxu0 0.0
        %1216 = vmatprep.subr.mxu0 0.0
        %1217 = vmatpush2.msra.mxu0 0.0
        %1218 = vmatprep.subr.mxu0 0.0
        %1219 = vmatpush2.msra.mxu0 0.0
        %1220 = vmatprep.subr.mxu0 0.0
        %1221 = vmatpush2.msra.mxu0 0.0
        %1222 = vmatprep.subr.mxu0 0.0
        %1223 = vmatpush2.msra.mxu0 0.0
        %1224 = vmatprep.subr.mxu0 0.0
        %1225 = vmatpush2.msra.mxu0 0.0
        %1226 = vmatprep.subr.mxu0 0.0
        %1227 = vmatpush2.msra.mxu0 0.0
        %1228 = vmatprep.subr.mxu0 0.0
        %1229 = vmatpush2.msra.mxu0 0.0
        %1230 = vmatprep.subr.mxu0 0.0
        %1231 = vmatpush2.msra.mxu0 0.0
        %1232 = vmatprep.subr.mxu0 0.0
        %1233 = vmatpush2.msra.mxu0 0.0
        %1234 = vmatprep.subr.mxu0 0.0
        %1235 = vmatpush2.msra.mxu0 0.0
        %1236 = vmatprep.subr.mxu0 0.0
        %1237 = vmatpush2.msra.mxu0 0.0
        %1238 = vmatprep.mubr.f32.mxu0 0.0
        %1239 = vmatmul.mubr.f32.gmra.mxu0 %v1095
        %v1240 = vpop.f32.mrf.mxu0
        %v1241 = vadd.f32 0.0, %v1240
        %v1242 = vpop.f32.mrf.mxu0
        %1243 = vdwg.mxu0
        %v1244 = vadd.f32 %v1074, %v1170
        %v1245 = vadd.f32 %v1075, %v1172
        %v1246 = vadd.f32 %v1076, %v1241
        %v1247 = vld [vmem:[%s1] sm:$0xff]
        %v1248 = vld [vmem:[%s248] sm:$0x77]
        %v1249 = vld [vmem:[%s248 + $0x8] sm:$0x7]
        %1251 = vrot.lane.b32.xlu0 %v1247, 110
        %v1252 = vpop.permute.xlu0 %1251
        %v1255 = vcombine.high %v1248, %v1248
        %1256 = vrot.lane.b32.xlu0 %v1248, 92
        %v1257 = vpop.permute.xlu0 %1256
        %1258 = vrot.lane.b32.xlu0 %v1255, 92
        %v1259 = vpop.permute.xlu0 %1258
        %1260 = vrot.lane.b32.xlu0 %v1249, 92
        %v1261 = vpop.permute.xlu0 %1260
        %vm1262 = vcmask 752640
        %v1263 = vsel %vm1262, %v1257, %v1259
        %v1264 = vsel %vm1262, %v1259, %v1261
        %v1265 = vsel %vm267, %v1252, 0
        %v1267 = vsel %vm270, %v1263, 0
        %v1269 = vsel %vm270, %v1264, 0
        %v1271 = vsel %vm270, %v1261, 0
        %1273 = vmatprep.subr.mxu0 0.0
        %1274 = vmatpush1.msra.mxu0 0.0
        %1275 = vmatprep.subr.mxu0 0.0
        %1276 = vmatpush1.msra.mxu0 0.0
        %1277 = vmatprep.subr.mxu0 0.0
        %1278 = vmatpush1.msra.mxu0 0.0
        %1279 = vmatprep.subr.mxu0 0.0
        %1280 = vmatpush1.msra.mxu0 0.0
        %1281 = vmatprep.subr.mxu0 0.0
        %1282 = vmatpush1.msra.mxu0 0.0
        %1283 = vmatprep.subr.mxu0 0.0
        %1284 = vmatpush1.msra.mxu0 0.0
        %1285 = vmatprep.subr.mxu0 0.0
        %1286 = vmatpush1.msra.mxu0 0.0
        %1287 = vmatprep.subr.mxu0 0.0
        %1288 = vmatpush1.msra.mxu0 0.0
        %1289 = vmatprep.subr.mxu0 0.0
        %1290 = vmatpush1.msra.mxu0 0.0
        %1291 = vmatprep.subr.mxu0 0.0
        %1292 = vmatpush1.msra.mxu0 0.0
        %1293 = vmatprep.subr.mxu0 0.0
        %1294 = vmatpush1.msra.mxu0 0.0
        %1295 = vmatprep.subr.mxu0 0.0
        %1296 = vmatpush1.msra.mxu0 0.0
        %1297 = vmatprep.subr.mxu0 0.0
        %1298 = vmatpush1.msra.mxu0 0.0
        %1299 = vmatprep.subr.mxu0 0.0
        %1300 = vmatpush1.msra.mxu0 0.0
        %1301 = vmatprep.subr.mxu0 0.0
        %1302 = vmatpush1.msra.mxu0 0.0
        %1303 = vmatprep.subr.mxu0 %v1269
        %1304 = vmatpush1.msra.mxu0 %v1267
        %1305 = vmatprep.subr.mxu0 0.0
        %1306 = vmatpush2.msra.mxu0 0.0
        %1307 = vmatprep.subr.mxu0 0.0
        %1308 = vmatpush2.msra.mxu0 0.0
        %1309 = vmatprep.subr.mxu0 0.0
        %1310 = vmatpush2.msra.mxu0 0.0
        %1311 = vmatprep.subr.mxu0 0.0
        %1312 = vmatpush2.msra.mxu0 0.0
        %1313 = vmatprep.subr.mxu0 0.0
        %1314 = vmatpush2.msra.mxu0 0.0
        %1315 = vmatprep.subr.mxu0 0.0
        %1316 = vmatpush2.msra.mxu0 0.0
        %1317 = vmatprep.subr.mxu0 0.0
        %1318 = vmatpush2.msra.mxu0 0.0
        %1319 = vmatprep.subr.mxu0 0.0
        %1320 = vmatpush2.msra.mxu0 0.0
        %1321 = vmatprep.subr.mxu0 0.0
        %1322 = vmatpush2.msra.mxu0 0.0
        %1323 = vmatprep.subr.mxu0 0.0
        %1324 = vmatpush2.msra.mxu0 0.0
        %1325 = vmatprep.subr.mxu0 0.0
        %1326 = vmatpush2.msra.mxu0 0.0
        %1327 = vmatprep.subr.mxu0 0.0
        %1328 = vmatpush2.msra.mxu0 0.0
        %1329 = vmatprep.subr.mxu0 0.0
        %1330 = vmatpush2.msra.mxu0 0.0
        %1331 = vmatprep.subr.mxu0 0.0
        %1332 = vmatpush2.msra.mxu0 0.0
        %1333 = vmatprep.subr.mxu0 0.0
        %1334 = vmatpush2.msra.mxu0 0.0
        %1335 = vmatprep.subr.mxu0 0.0
        %1336 = vmatpush2.msra.mxu0 0.0
        %1337 = vmatprep.mubr.f32.mxu0 0.0
        %1338 = vmatmul.mubr.f32.gmra.mxu0 %v1265
        %v1339 = vpop.f32.mrf.mxu0
        %v1340 = vadd.f32 0.0, %v1339
        %v1341 = vpop.f32.mrf.mxu0
        %v1342 = vadd.f32 0.0, %v1341
        %1343 = vdwg.mxu0
        %1344 = vmatprep.subr.mxu0 0.0
        %1345 = vmatpush1.msra.mxu0 0.0
        %1346 = vmatprep.subr.mxu0 0.0
        %1347 = vmatpush1.msra.mxu0 0.0
        %1348 = vmatprep.subr.mxu0 0.0
        %1349 = vmatpush1.msra.mxu0 0.0
        %1350 = vmatprep.subr.mxu0 0.0
        %1351 = vmatpush1.msra.mxu0 0.0
        %1352 = vmatprep.subr.mxu0 0.0
        %1353 = vmatpush1.msra.mxu0 0.0
        %1354 = vmatprep.subr.mxu0 0.0
        %1355 = vmatpush1.msra.mxu0 0.0
        %1356 = vmatprep.subr.mxu0 0.0
        %1357 = vmatpush1.msra.mxu0 0.0
        %1358 = vmatprep.subr.mxu0 0.0
        %1359 = vmatpush1.msra.mxu0 0.0
        %1360 = vmatprep.subr.mxu0 0.0
        %1361 = vmatpush1.msra.mxu0 0.0
        %1362 = vmatprep.subr.mxu0 0.0
        %1363 = vmatpush1.msra.mxu0 0.0
        %1364 = vmatprep.subr.mxu0 0.0
        %1365 = vmatpush1.msra.mxu0 0.0
        %1366 = vmatprep.subr.mxu0 0.0
        %1367 = vmatpush1.msra.mxu0 0.0
        %1368 = vmatprep.subr.mxu0 0.0
        %1369 = vmatpush1.msra.mxu0 0.0
        %1370 = vmatprep.subr.mxu0 0.0
        %1371 = vmatpush1.msra.mxu0 0.0
        %1372 = vmatprep.subr.mxu0 0.0
        %1373 = vmatpush1.msra.mxu0 0.0
        %1374 = vmatprep.subr.mxu0 0.0
        %1375 = vmatpush1.msra.mxu0 %v1271
        %1376 = vmatprep.subr.mxu0 0.0
        %1377 = vmatpush2.msra.mxu0 0.0
        %1378 = vmatprep.subr.mxu0 0.0
        %1379 = vmatpush2.msra.mxu0 0.0
        %1380 = vmatprep.subr.mxu0 0.0
        %1381 = vmatpush2.msra.mxu0 0.0
        %1382 = vmatprep.subr.mxu0 0.0
        %1383 = vmatpush2.msra.mxu0 0.0
        %1384 = vmatprep.subr.mxu0 0.0
        %1385 = vmatpush2.msra.mxu0 0.0
        %1386 = vmatprep.subr.mxu0 0.0
        %1387 = vmatpush2.msra.mxu0 0.0
        %1388 = vmatprep.subr.mxu0 0.0
        %1389 = vmatpush2.msra.mxu0 0.0
        %1390 = vmatprep.subr.mxu0 0.0
        %1391 = vmatpush2.msra.mxu0 0.0
        %1392 = vmatprep.subr.mxu0 0.0
        %1393 = vmatpush2.msra.mxu0 0.0
        %1394 = vmatprep.subr.mxu0 0.0
        %1395 = vmatpush2.msra.mxu0 0.0
        %1396 = vmatprep.subr.mxu0 0.0
        %1397 = vmatpush2.msra.mxu0 0.0
        %1398 = vmatprep.subr.mxu0 0.0
        %1399 = vmatpush2.msra.mxu0 0.0
        %1400 = vmatprep.subr.mxu0 0.0
        %1401 = vmatpush2.msra.mxu0 0.0
        %1402 = vmatprep.subr.mxu0 0.0
        %1403 = vmatpush2.msra.mxu0 0.0
        %1404 = vmatprep.subr.mxu0 0.0
        %1405 = vmatpush2.msra.mxu0 0.0
        %1406 = vmatprep.subr.mxu0 0.0
        %1407 = vmatpush2.msra.mxu0 0.0
        %1408 = vmatprep.mubr.f32.mxu0 0.0
        %1409 = vmatmul.mubr.f32.gmra.mxu0 %v1265
        %v1410 = vpop.f32.mrf.mxu0
        %v1411 = vadd.f32 0.0, %v1410
        %v1412 = vpop.f32.mrf.mxu0
        %1413 = vdwg.mxu0
        %v1414 = vadd.f32 %v1244, %v1340
        %v1415 = vadd.f32 %v1245, %v1342
        %v1416 = vadd.f32 %v1246, %v1411
        %v1417 = vld [vmem:[%s1] sm:$0xff]
        %v1418 = vld [vmem:[%s248] sm:$0x77]
        %v1419 = vld [vmem:[%s248 + $0x8] sm:$0x7]
        %1421 = vrot.lane.b32.xlu0 %v1417, 107
        %v1422 = vpop.permute.xlu0 %1421
        %v1425 = vcombine.high %v1418, %v1418
        %1426 = vrot.lane.b32.xlu0 %v1418, 91
        %v1427 = vpop.permute.xlu0 %1426
        %1428 = vrot.lane.b32.xlu0 %v1425, 91
        %v1429 = vpop.permute.xlu0 %1428
        %1430 = vrot.lane.b32.xlu0 %v1419, 91
        %v1431 = vpop.permute.xlu0 %1430
        %vm1432 = vcmask 744448
        %v1433 = vsel %vm1432, %v1427, %v1429
        %v1434 = vsel %vm1432, %v1429, %v1431
        %v1435 = vsel %vm267, %v1422, 0
        %v1437 = vsel %vm270, %v1433, 0
        %v1439 = vsel %vm270, %v1434, 0
        %v1441 = vsel %vm270, %v1431, 0
        %1443 = vmatprep.subr.mxu0 0.0
        %1444 = vmatpush1.msra.mxu0 0.0
        %1445 = vmatprep.subr.mxu0 0.0
        %1446 = vmatpush1.msra.mxu0 0.0
        %1447 = vmatprep.subr.mxu0 0.0
        %1448 = vmatpush1.msra.mxu0 0.0
        %1449 = vmatprep.subr.mxu0 0.0
        %1450 = vmatpush1.msra.mxu0 0.0
        %1451 = vmatprep.subr.mxu0 0.0
        %1452 = vmatpush1.msra.mxu0 0.0
        %1453 = vmatprep.subr.mxu0 0.0
        %1454 = vmatpush1.msra.mxu0 0.0
        %1455 = vmatprep.subr.mxu0 0.0
        %1456 = vmatpush1.msra.mxu0 0.0
        %1457 = vmatprep.subr.mxu0 0.0
        %1458 = vmatpush1.msra.mxu0 0.0
        %1459 = vmatprep.subr.mxu0 0.0
        %1460 = vmatpush1.msra.mxu0 0.0
        %1461 = vmatprep.subr.mxu0 0.0
        %1462 = vmatpush1.msra.mxu0 0.0
        %1463 = vmatprep.subr.mxu0 0.0
        %1464 = vmatpush1.msra.mxu0 0.0
        %1465 = vmatprep.subr.mxu0 0.0
        %1466 = vmatpush1.msra.mxu0 0.0
        %1467 = vmatprep.subr.mxu0 0.0
        %1468 = vmatpush1.msra.mxu0 0.0
        %1469 = vmatprep.subr.mxu0 0.0
        %1470 = vmatpush1.msra.mxu0 0.0
        %1471 = vmatprep.subr.mxu0 0.0
        %1472 = vmatpush1.msra.mxu0 0.0
        %1473 = vmatprep.subr.mxu0 %v1439
        %1474 = vmatpush1.msra.mxu0 %v1437
        %1475 = vmatprep.subr.mxu0 0.0
        %1476 = vmatpush2.msra.mxu0 0.0
        %1477 = vmatprep.subr.mxu0 0.0
        %1478 = vmatpush2.msra.mxu0 0.0
        %1479 = vmatprep.subr.mxu0 0.0
        %1480 = vmatpush2.msra.mxu0 0.0
        %1481 = vmatprep.subr.mxu0 0.0
        %1482 = vmatpush2.msra.mxu0 0.0
        %1483 = vmatprep.subr.mxu0 0.0
        %1484 = vmatpush2.msra.mxu0 0.0
        %1485 = vmatprep.subr.mxu0 0.0
        %1486 = vmatpush2.msra.mxu0 0.0
        %1487 = vmatprep.subr.mxu0 0.0
        %1488 = vmatpush2.msra.mxu0 0.0
        %1489 = vmatprep.subr.mxu0 0.0
        %1490 = vmatpush2.msra.mxu0 0.0
        %1491 = vmatprep.subr.mxu0 0.0
        %1492 = vmatpush2.msra.mxu0 0.0
        %1493 = vmatprep.subr.mxu0 0.0
        %1494 = vmatpush2.msra.mxu0 0.0
        %1495 = vmatprep.subr.mxu0 0.0
        %1496 = vmatpush2.msra.mxu0 0.0
        %1497 = vmatprep.subr.mxu0 0.0
        %1498 = vmatpush2.msra.mxu0 0.0
        %1499 = vmatprep.subr.mxu0 0.0
        %1500 = vmatpush2.msra.mxu0 0.0
        %1501 = vmatprep.subr.mxu0 0.0
        %1502 = vmatpush2.msra.mxu0 0.0
        %1503 = vmatprep.subr.mxu0 0.0
        %1504 = vmatpush2.msra.mxu0 0.0
        %1505 = vmatprep.subr.mxu0 0.0
        %1506 = vmatpush2.msra.mxu0 0.0
        %1507 = vmatprep.mubr.f32.mxu0 0.0
        %1508 = vmatmul.mubr.f32.gmra.mxu0 %v1435
        %v1509 = vpop.f32.mrf.mxu0
        %v1510 = vadd.f32 0.0, %v1509
        %v1511 = vpop.f32.mrf.mxu0
        %v1512 = vadd.f32 0.0, %v1511
        %1513 = vdwg.mxu0
        %1514 = vmatprep.subr.mxu0 0.0
        %1515 = vmatpush1.msra.mxu0 0.0
        %1516 = vmatprep.subr.mxu0 0.0
        %1517 = vmatpush1.msra.mxu0 0.0
        %1518 = vmatprep.subr.mxu0 0.0
        %1519 = vmatpush1.msra.mxu0 0.0
        %1520 = vmatprep.subr.mxu0 0.0
        %1521 = vmatpush1.msra.mxu0 0.0
        %1522 = vmatprep.subr.mxu0 0.0
        %1523 = vmatpush1.msra.mxu0 0.0
        %1524 = vmatprep.subr.mxu0 0.0
        %1525 = vmatpush1.msra.mxu0 0.0
        %1526 = vmatprep.subr.mxu0 0.0
        %1527 = vmatpush1.msra.mxu0 0.0
        %1528 = vmatprep.subr.mxu0 0.0
        %1529 = vmatpush1.msra.mxu0 0.0
        %1530 = vmatprep.subr.mxu0 0.0
        %1531 = vmatpush1.msra.mxu0 0.0
        %1532 = vmatprep.subr.mxu0 0.0
        %1533 = vmatpush1.msra.mxu0 0.0
        %1534 = vmatprep.subr.mxu0 0.0
        %1535 = vmatpush1.msra.mxu0 0.0
        %1536 = vmatprep.subr.mxu0 0.0
        %1537 = vmatpush1.msra.mxu0 0.0
        %1538 = vmatprep.subr.mxu0 0.0
        %1539 = vmatpush1.msra.mxu0 0.0
        %1540 = vmatprep.subr.mxu0 0.0
        %1541 = vmatpush1.msra.mxu0 0.0
        %1542 = vmatprep.subr.mxu0 0.0
        %1543 = vmatpush1.msra.mxu0 0.0
        %1544 = vmatprep.subr.mxu0 0.0
        %1545 = vmatpush1.msra.mxu0 %v1441
        %1546 = vmatprep.subr.mxu0 0.0
        %1547 = vmatpush2.msra.mxu0 0.0
        %1548 = vmatprep.subr.mxu0 0.0
        %1549 = vmatpush2.msra.mxu0 0.0
        %1550 = vmatprep.subr.mxu0 0.0
        %1551 = vmatpush2.msra.mxu0 0.0
        %1552 = vmatprep.subr.mxu0 0.0
        %1553 = vmatpush2.msra.mxu0 0.0
        %1554 = vmatprep.subr.mxu0 0.0
        %1555 = vmatpush2.msra.mxu0 0.0
        %1556 = vmatprep.subr.mxu0 0.0
        %1557 = vmatpush2.msra.mxu0 0.0
        %1558 = vmatprep.subr.mxu0 0.0
        %1559 = vmatpush2.msra.mxu0 0.0
        %1560 = vmatprep.subr.mxu0 0.0
        %1561 = vmatpush2.msra.mxu0 0.0
        %1562 = vmatprep.subr.mxu0 0.0
        %1563 = vmatpush2.msra.mxu0 0.0
        %1564 = vmatprep.subr.mxu0 0.0
        %1565 = vmatpush2.msra.mxu0 0.0
        %1566 = vmatprep.subr.mxu0 0.0
        %1567 = vmatpush2.msra.mxu0 0.0
        %1568 = vmatprep.subr.mxu0 0.0
        %1569 = vmatpush2.msra.mxu0 0.0
        %1570 = vmatprep.subr.mxu0 0.0
        %1571 = vmatpush2.msra.mxu0 0.0
        %1572 = vmatprep.subr.mxu0 0.0
        %1573 = vmatpush2.msra.mxu0 0.0
        %1574 = vmatprep.subr.mxu0 0.0
        %1575 = vmatpush2.msra.mxu0 0.0
        %1576 = vmatprep.subr.mxu0 0.0
        %1577 = vmatpush2.msra.mxu0 0.0
        %1578 = vmatprep.mubr.f32.mxu0 0.0
        %1579 = vmatmul.mubr.f32.gmra.mxu0 %v1435
        %v1580 = vpop.f32.mrf.mxu0
        %v1581 = vadd.f32 0.0, %v1580
        %v1582 = vpop.f32.mrf.mxu0
        %1583 = vdwg.mxu0
        %v1584 = vadd.f32 %v1414, %v1510
        %v1585 = vadd.f32 %v1415, %v1512
        %v1586 = vadd.f32 %v1416, %v1581
        %v1587 = vld [vmem:[%s1] sm:$0xff]
        %v1588 = vld [vmem:[%s248] sm:$0x77]
        %v1589 = vld [vmem:[%s248 + $0x8] sm:$0x7]
        %1591 = vrot.lane.b32.xlu0 %v1587, 104
        %v1592 = vpop.permute.xlu0 %1591
        %v1595 = vcombine.high %v1588, %v1588
        %1596 = vrot.lane.b32.xlu0 %v1588, 90
        %v1597 = vpop.permute.xlu0 %1596
        %1598 = vrot.lane.b32.xlu0 %v1595, 90
        %v1599 = vpop.permute.xlu0 %1598
        %1600 = vrot.lane.b32.xlu0 %v1589, 90
        %v1601 = vpop.permute.xlu0 %1600
        %vm1602 = vcmask 736256
        %v1603 = vsel %vm1602, %v1597, %v1599
        %v1604 = vsel %vm1602, %v1599, %v1601
        %v1605 = vsel %vm267, %v1592, 0
        %v1607 = vsel %vm270, %v1603, 0
        %v1609 = vsel %vm270, %v1604, 0
        %v1611 = vsel %vm270, %v1601, 0
        %1613 = vmatprep.subr.mxu0 0.0
        %1614 = vmatpush1.msra.mxu0 0.0
        %1615 = vmatprep.subr.mxu0 0.0
        %1616 = vmatpush1.msra.mxu0 0.0
        %1617 = vmatprep.subr.mxu0 0.0
        %1618 = vmatpush1.msra.mxu0 0.0
        %1619 = vmatprep.subr.mxu0 0.0
        %1620 = vmatpush1.msra.mxu0 0.0
        %1621 = vmatprep.subr.mxu0 0.0
        %1622 = vmatpush1.msra.mxu0 0.0
        %1623 = vmatprep.subr.mxu0 0.0
        %1624 = vmatpush1.msra.mxu0 0.0
        %1625 = vmatprep.subr.mxu0 0.0
        %1626 = vmatpush1.msra.mxu0 0.0
        %1627 = vmatprep.subr.mxu0 0.0
        %1628 = vmatpush1.msra.mxu0 0.0
        %1629 = vmatprep.subr.mxu0 0.0
        %1630 = vmatpush1.msra.mxu0 0.0
        %1631 = vmatprep.subr.mxu0 0.0
        %1632 = vmatpush1.msra.mxu0 0.0
        %1633 = vmatprep.subr.mxu0 0.0
        %1634 = vmatpush1.msra.mxu0 0.0
        %1635 = vmatprep.subr.mxu0 0.0
        %1636 = vmatpush1.msra.mxu0 0.0
        %1637 = vmatprep.subr.mxu0 0.0
        %1638 = vmatpush1.msra.mxu0 0.0
        %1639 = vmatprep.subr.mxu0 0.0
        %1640 = vmatpush1.msra.mxu0 0.0
        %1641 = vmatprep.subr.mxu0 0.0
        %1642 = vmatpush1.msra.mxu0 0.0
        %1643 = vmatprep.subr.mxu0 %v1609
        %1644 = vmatpush1.msra.mxu0 %v1607
        %1645 = vmatprep.subr.mxu0 0.0
        %1646 = vmatpush2.msra.mxu0 0.0
        %1647 = vmatprep.subr.mxu0 0.0
        %1648 = vmatpush2.msra.mxu0 0.0
        %1649 = vmatprep.subr.mxu0 0.0
        %1650 = vmatpush2.msra.mxu0 0.0
        %1651 = vmatprep.subr.mxu0 0.0
        %1652 = vmatpush2.msra.mxu0 0.0
        %1653 = vmatprep.subr.mxu0 0.0
        %1654 = vmatpush2.msra.mxu0 0.0
        %1655 = vmatprep.subr.mxu0 0.0
        %1656 = vmatpush2.msra.mxu0 0.0
        %1657 = vmatprep.subr.mxu0 0.0
        %1658 = vmatpush2.msra.mxu0 0.0
        %1659 = vmatprep.subr.mxu0 0.0
        %1660 = vmatpush2.msra.mxu0 0.0
        %1661 = vmatprep.subr.mxu0 0.0
        %1662 = vmatpush2.msra.mxu0 0.0
        %1663 = vmatprep.subr.mxu0 0.0
        %1664 = vmatpush2.msra.mxu0 0.0
        %1665 = vmatprep.subr.mxu0 0.0
        %1666 = vmatpush2.msra.mxu0 0.0
        %1667 = vmatprep.subr.mxu0 0.0
        %1668 = vmatpush2.msra.mxu0 0.0
        %1669 = vmatprep.subr.mxu0 0.0
        %1670 = vmatpush2.msra.mxu0 0.0
        %1671 = vmatprep.subr.mxu0 0.0
        %1672 = vmatpush2.msra.mxu0 0.0
        %1673 = vmatprep.subr.mxu0 0.0
        %1674 = vmatpush2.msra.mxu0 0.0
        %1675 = vmatprep.subr.mxu0 0.0
        %1676 = vmatpush2.msra.mxu0 0.0
        %1677 = vmatprep.mubr.f32.mxu0 0.0
        %1678 = vmatmul.mubr.f32.gmra.mxu0 %v1605
        %v1679 = vpop.f32.mrf.mxu0
        %v1680 = vadd.f32 0.0, %v1679
        %v1681 = vpop.f32.mrf.mxu0
        %v1682 = vadd.f32 0.0, %v1681
        %1683 = vdwg.mxu0
        %1684 = vmatprep.subr.mxu0 0.0
        %1685 = vmatpush1.msra.mxu0 0.0
        %1686 = vmatprep.subr.mxu0 0.0
        %1687 = vmatpush1.msra.mxu0 0.0
        %1688 = vmatprep.subr.mxu0 0.0
        %1689 = vmatpush1.msra.mxu0 0.0
        %1690 = vmatprep.subr.mxu0 0.0
        %1691 = vmatpush1.msra.mxu0 0.0
        %1692 = vmatprep.subr.mxu0 0.0
        %1693 = vmatpush1.msra.mxu0 0.0
        %1694 = vmatprep.subr.mxu0 0.0
        %1695 = vmatpush1.msra.mxu0 0.0
        %1696 = vmatprep.subr.mxu0 0.0
        %1697 = vmatpush1.msra.mxu0 0.0
        %1698 = vmatprep.subr.mxu0 0.0
        %1699 = vmatpush1.msra.mxu0 0.0
        %1700 = vmatprep.subr.mxu0 0.0
        %1701 = vmatpush1.msra.mxu0 0.0
        %1702 = vmatprep.subr.mxu0 0.0
        %1703 = vmatpush1.msra.mxu0 0.0
        %1704 = vmatprep.subr.mxu0 0.0
        %1705 = vmatpush1.msra.mxu0 0.0
        %1706 = vmatprep.subr.mxu0 0.0
        %1707 = vmatpush1.msra.mxu0 0.0
        %1708 = vmatprep.subr.mxu0 0.0
        %1709 = vmatpush1.msra.mxu0 0.0
        %1710 = vmatprep.subr.mxu0 0.0
        %1711 = vmatpush1.msra.mxu0 0.0
        %1712 = vmatprep.subr.mxu0 0.0
        %1713 = vmatpush1.msra.mxu0 0.0
        %1714 = vmatprep.subr.mxu0 0.0
        %1715 = vmatpush1.msra.mxu0 %v1611
        %1716 = vmatprep.subr.mxu0 0.0
        %1717 = vmatpush2.msra.mxu0 0.0
        %1718 = vmatprep.subr.mxu0 0.0
        %1719 = vmatpush2.msra.mxu0 0.0
        %1720 = vmatprep.subr.mxu0 0.0
        %1721 = vmatpush2.msra.mxu0 0.0
        %1722 = vmatprep.subr.mxu0 0.0
        %1723 = vmatpush2.msra.mxu0 0.0
        %1724 = vmatprep.subr.mxu0 0.0
        %1725 = vmatpush2.msra.mxu0 0.0
        %1726 = vmatprep.subr.mxu0 0.0
        %1727 = vmatpush2.msra.mxu0 0.0
        %1728 = vmatprep.subr.mxu0 0.0
        %1729 = vmatpush2.msra.mxu0 0.0
        %1730 = vmatprep.subr.mxu0 0.0
        %1731 = vmatpush2.msra.mxu0 0.0
        %1732 = vmatprep.subr.mxu0 0.0
        %1733 = vmatpush2.msra.mxu0 0.0
        %1734 = vmatprep.subr.mxu0 0.0
        %1735 = vmatpush2.msra.mxu0 0.0
        %1736 = vmatprep.subr.mxu0 0.0
        %1737 = vmatpush2.msra.mxu0 0.0
        %1738 = vmatprep.subr.mxu0 0.0
        %1739 = vmatpush2.msra.mxu0 0.0
        %1740 = vmatprep.subr.mxu0 0.0
        %1741 = vmatpush2.msra.mxu0 0.0
        %1742 = vmatprep.subr.mxu0 0.0
        %1743 = vmatpush2.msra.mxu0 0.0
        %1744 = vmatprep.subr.mxu0 0.0
        %1745 = vmatpush2.msra.mxu0 0.0
        %1746 = vmatprep.subr.mxu0 0.0
        %1747 = vmatpush2.msra.mxu0 0.0
        %1748 = vmatprep.mubr.f32.mxu0 0.0
        %1749 = vmatmul.mubr.f32.gmra.mxu0 %v1605
        %v1750 = vpop.f32.mrf.mxu0
        %v1751 = vadd.f32 0.0, %v1750
        %v1752 = vpop.f32.mrf.mxu0
        %1753 = vdwg.mxu0
        %v1754 = vadd.f32 %v1584, %v1680
        %v1755 = vadd.f32 %v1585, %v1682
        %v1756 = vadd.f32 %v1586, %v1751
        %v1757 = vld [vmem:[%s2] sm:$0xff]
        %1759 = vset.pattern.permute.xlu0 0
        %1760 = vperm.xlu0 %1759, %v1757
        %v1761 = vpop.permute.xlu0 %1760
        %v1763 = vadd.f32 %v1754, %v1761
        %v1764 = vadd.f32 %v1755, %v1761
        %v1765 = vadd.f32 %v1756, %v1761
        %v1766 = vmax.f32 %v1763, 0.0
        %v1767 = vmax.f32 %v1764, 0.0
        %v1768 = vmax.f32 %v1765, 0.0
        %v1769 = vld [vmem:[%s3] sm:$0x7]
        %v1771 = vlaneseq
        %v1772 = vshrl.u32 %v1771, 7
        %v1773 = vsub.s32 0, %v1772
        %v1774 = vrot.slane %v1769, %v1773
        %v1775 = vlaneseq
        %v1776 = vshrl.u32 %v1775, 7
        %v1777 = vsub.s32 1, %v1776
        %v1778 = vrot.slane %v1769, %v1777
        %v1779 = vlaneseq
        %v1780 = vshrl.u32 %v1779, 7
        %v1781 = vsub.s32 2, %v1780
        %v1782 = vrot.slane %v1769, %v1781
        %v1786 = vmul.f32 %v1766, %v1774
        %v1787 = vmul.f32 %v1767, %v1778
        %v1788 = vmul.f32 %v1768, %v1782
        %v1789 = vadd.f32 %v1786, %v1787
        %vm1790 = vcmask 261120
        %v1791 = vsel %vm1790, %v1788, 0.0
        %v1792 = vadd.f32 %v1789, %v1791
        %1793 = vadd.xlane.f32.xlu0 %v1792
        %v1794 = vpop.xlane.xlu0 %1793
        %v1795 = vadd.f32 %v1794, 0.0
        %v1796 = vld [vmem:[%s4] sm:$0xff]
        %v1797 = vmul.f32 %v1795, %v1796
        %v1798 = vrot.slane %v1797, 4
        %v1799 = vadd.f32 %v1797, %v1798
        %v1800 = vrot.slane %v1799, 2
        %v1801 = vadd.f32 %v1799, %v1800
        %v1802 = vrot.slane %v1801, 1
        %v1803 = vadd.f32 %v1801, %v1802
        %v1804 = vld [vmem:[%s5] sm:$0x1]
        %v1805 = vadd.f32 %v1803, %v1804
        %v1806 = vmul.f32 %v1805, %v1805
        %vm1807 = vcmask 1040384
        %v1808 = vsel %vm1807, %v1806, 0.0
        %1809 = vadd.xlane.f32.xlu0 %v1808
        %v1810 = vpop.xlane.xlu0 %1809
        %v1811 = vmax.f32 %v1810, 1e-24
        %v1812 = vrsqrt.pop %v1811
        %v1813 = vmul.f32 %v1805, %v1812
        %1814 = vst [vmem:[%s243] sm:$0x1] %v1813
        %s1815 = sand.u32 %s159, 1
        %s1816 = scalar_lea.sflag [#allocation3], %s1815
        %s1817 = sand.u32 %s159, 1
        %s1818 = scalar_lea.vmem [#allocation2], %s1817
        // Predicated region
        $region45: #{tpu_custom_call.1} parent=43 // pred_check
          %p1819 = pneg %p169
        $region46: #{tpu_custom_call.1} parent=43 // pred_check_branch
          %1821 = sbr.rel (%p1819) target = $region48
        $region47: #{tpu_custom_call.1} parent=43 // pred_region
          %s1823 = ssub.s32 16, 16
          %1824 = vsyncadd %s1816, %s1823
          %s1825 = smul.addr %s20, 16
          %s1826 = scalar_lea.hbm %s6, %s1825
          %s1828 = sshll.u32 %s1818, 4
          %s1829 = int_to_ptr.vmem [resolvable:$true] %s1828
          %1831 = dma.vmem_to_hbm [thread:$0]  %s1829, 16, %s1826, %s1816
        $region48: #{tpu_custom_call.1} parent=43 // pred_fallthru
          _
      $region44: #{tpu_custom_call.1} parent=5 // pred_fallthru
        _
      %p1832 = scmp.le.s32.totalorder 2, %s15
      // Predicated region
      $region49: #{tpu_custom_call.1} parent=5 // pred_check
        %p1833 = pneg %p1832
      $region50: #{tpu_custom_call.1} parent=5 // pred_check_branch
        %1835 = sbr.rel (%p1833) target = $region52
      $region51: #{tpu_custom_call.1} parent=5 // pred_region
        %s1836 = ssub.s32 %s15, 2
        // Predicated region
        $region53: #{tpu_custom_call.1} parent=51 // pred_check
          %p1837 = pneg %p175
        $region54: #{tpu_custom_call.1} parent=51 // pred_check_branch
          %1839 = sbr.rel (%p1837) target = $region56
        $region55: #{tpu_custom_call.1} parent=51 // pred_region
          %s1840 = sand.u32 %s160, 1
          %s1841 = scalar_lea.sflag [#allocation3], %s1840
          %s1842 = sand.u32 %s160, 1
          %s1843 = scalar_lea.vmem [#allocation2], %s1842
          %1844 = dma.done %s1841, 16
        $region56: #{tpu_custom_call.1} parent=51 // pred_fallthru
          _
      $region52: #{tpu_custom_call.1} parent=5 // pred_fallthru
        _
    $region6: #{tpu_custom_call.1} parent=1 // loop_footer
      %s19 = sadd.s32 1, %s15
    $region7: #{tpu_custom_call.1} parent=1 // loop_footer_branch
      %14 = sbr.rel target = $region3
    $region8: #{tpu_custom_call.1} parent=1 // loop_exit
      _
    %1845 = vsyncpa [#allocation3], 1
    %s1846 = scalar_lea.sflag [#allocation3], 1
    %1847 = vsyncpa %s1846, 1

</llo_original>
